<compile_context>
chip_gen: v5e
topology: v5e:2x2
jax: 0.10.0
libtpu: 0.0.40
codegen_flags: <defaults>
</compile_context>

<pallas_src>
import functools

import jax
import jax.numpy as jnp
from jax.experimental import pallas as pl
from jax.experimental.pallas import tpu as pltpu


def basic_block_kernel(x_ref, w1_ref, w2_ref, bias_ref, mask_ref, out_ref,
                       *scratch, W, HW, nb, tap_streamed):
    """One grid step: nb images, both convs + BN biases + residual + ReLUs."""
    C = x_ref.shape[1]            # channels (== Cin == Cout)
    L = nb * HW                   # lane-stacked pixel count for this step
    pad = W + 1                   # halo width on each side of the flat strip
    flat_ref = scratch[0]
    dt = flat_ref.dtype

    offsets = [(oh, ow) for oh in (-1, 0, 1) for ow in (-1, 0, 1)]

    # Zero only the two tiny halo strips; the interior [pad, pad+L) is always
    # fully overwritten before each conv.  (Masks make halo taps contribute 0,
    # but uninitialized VMEM could hold NaN bit patterns, and NaN*0 = NaN.)
    halo = jnp.zeros((C, pad), dt)
    flat_ref[:, 0:pad] = halo
    flat_ref[:, pad + L:pad + L + pad] = halo

    def conv(w_ref, center):
        """3x3 conv of the strip currently resident in flat_ref -> (C, L) f32.

        `center` is the (C, L) activation value already in registers (the
        strip interior), so the center tap never re-reads/copies VMEM."""
        if tap_streamed:
            # Per-tap accumulated matmuls; mask the f32 partial outputs.
            acc = jnp.dot(w_ref[4], center,
                          preferred_element_type=jnp.float32)   # center tap
            for t, (oh, ow) in enumerate(offsets):
                if oh == 0 and ow == 0:
                    continue
                start = pad + oh * W + ow                        # static offset
                tap = flat_ref[:, start:start + L]
                part = jnp.dot(w_ref[t], tap,
                               preferred_element_type=jnp.float32)
                acc = acc + part * mask_ref[t:t + 1, :]
            return acc
        else:
            # Fused K=9C path: build im2col in VMEM, single MXU matmul.
            col_ref = scratch[1]
            for t, (oh, ow) in enumerate(offsets):
                if oh == 0 and ow == 0:
                    col_ref[t * C:(t + 1) * C, :] = center       # no mask/load
                else:
                    start = pad + oh * W + ow                    # static offset
                    tap = flat_ref[:, start:start + L]
                    col_ref[t * C:(t + 1) * C, :] = tap * mask_ref[t:t + 1, :]
            return jnp.dot(w_ref[...], col_ref[...],
                           preferred_element_type=jnp.float32)

    # ---- stage the nb input images into the haloed strip (lane-stacked) ----
    for i in range(nb):
        flat_ref[:, pad + i * HW:pad + (i + 1) * HW] = x_ref[i]
    x = flat_ref[:, pad:pad + L]                 # (C, L) residual / center tap

    # ---- conv1 (BN1 scale folded into w1) + bias + relu ----
    out1 = conv(w1_ref, x)
    out1 = jnp.maximum(out1 + bias_ref[0], 0.0)  # f32

    # ---- conv2 (BN2 scale folded into w2) + bias + residual + relu ----
    act1 = out1.astype(dt)
    flat_ref[:, pad:pad + L] = act1              # reuse the same haloed strip
    out2 = conv(w2_ref, act1)
    out2 = jnp.maximum(out2 + bias_ref[1] + x.astype(jnp.float32), 0.0)

    # ---- per-image lane-dense stores ----
    for i in range(nb):
        out_ref[i] = out2[:, i * HW:(i + 1) * HW].astype(out_ref.dtype)


def _vmem_estimate(nb, *, C, HW, W, itemsize, tap_streamed):
    """Per-grid-step VMEM footprint (bytes), incl. f32 intermediates/weights."""
    L = nb * HW
    est = 2 * 2 * C * L * itemsize              # x / out blocks, double-buffered
    est += C * (L + 2 * (W + 1)) * itemsize     # haloed strip scratch
    if not tap_streamed:
        est += 9 * C * L * itemsize             # im2col scratch
    est += 2 * 2 * 9 * C * C * itemsize         # w1 + w2 (double-buffered)
    est += 2 * 9 * L * itemsize                 # edge masks (double-buffered)
    est += 3 * C * L * 4                        # f32 intermediates (out1/out2/acc)
    est += C * L * itemsize                     # residual value held across conv2
    return est


def _pick_images_per_block(n, est_fn, budget_bytes):
    """Pick nb | N.  Prefer an even G = N//nb >= 4 (v7x megacore: >=2 steps per
    TensorCore), then G >= 2, then the largest nb that fits the VMEM budget."""
    cands = [nb for nb in range(1, n + 1)
             if n % nb == 0 and est_fn(nb) <= budget_bytes]
    if not cands:
        return 1                                 # fallback; vmem_limit adds margin

    def score(nb):
        g = n // nb
        return (g >= 4 and g % 2 == 0, g >= 2, nb)

    return max(cands, key=score)


def basic_block_pallas(x_nchw, w1_oihw, s1, b1, w2_oihw, s2, b2,
                       tap_streamed=None):
    """x: (N, C, H, W) NCHW; weights OIHW; s/b = folded BN scale/bias, (C,)."""
    N, Cin, H, W = x_nchw.shape
    Cout = w1_oihw.shape[0]
    assert Cin == Cout, "BasicBlock with downsample=None requires Cin == Cout"
    C = Cout
    HW = H * W
    dtype = x_nchw.dtype
    itemsize = x_nchw.dtype.itemsize

    if tap_streamed is None:
        # Below the MXU K width (128 lanes) the fused K=9C matmul wastes no
        # passes; at ResNet-scale C the tap-streamed path drops the (9C, L)
        # scratch and halves conv-path VMEM traffic.
        tap_streamed = C >= 128

    # ---- generation-aware VMEM budgeting ----
    try:
        vmem_cap = int(pltpu.get_tpu_info().vmem_capacity_bytes)
    except Exception:
        vmem_cap = 64 << 20                      # conservative: v7x per-TC VMEM

    est_fn = functools.partial(_vmem_estimate, C=C, HW=HW, W=W,
                               itemsize=itemsize, tap_streamed=tap_streamed)
    nb = _pick_images_per_block(N, est_fn, budget_bytes=vmem_cap // 4)
    G = N // nb
    L = nb * HW

    est = est_fn(nb)
    vmem_limit = min((vmem_cap * 3) // 4, max(est + (8 << 20), 16 << 20))

    # ---- inputs: free reshape only (no wrapper transpose / HBM copy) ----
    x_flat = x_nchw.reshape(N, C, HW)

    # ---- fold BN scales into the conv weights; keep only the biases ----
    w1f = w1_oihw.astype(jnp.float32) * s1.astype(jnp.float32)[:, None, None, None]
    w2f = w2_oihw.astype(jnp.float32) * s2.astype(jnp.float32)[:, None, None, None]
    if tap_streamed:
        # (9, Cout, Cin), tap t = kh*3 + kw
        w1m = jnp.transpose(w1f, (2, 3, 0, 1)).reshape(9, C, Cin).astype(dtype)
        w2m = jnp.transpose(w2f, (2, 3, 0, 1)).reshape(9, C, C).astype(dtype)
        w1_spec = pl.BlockSpec((9, C, Cin), lambda g: (0, 0, 0))
        w2_spec = pl.BlockSpec((9, C, C), lambda g: (0, 0, 0))
    else:
        # (Cout, 9*Cin), tap-major (kh, kw), cin minor -> matches im2col layout
        w1m = jnp.transpose(w1f, (0, 2, 3, 1)).reshape(C, 9 * Cin).astype(dtype)
        w2m = jnp.transpose(w2f, (0, 2, 3, 1)).reshape(C, 9 * C).astype(dtype)
        w1_spec = pl.BlockSpec((C, 9 * Cin), lambda g: (0, 0))
        w2_spec = pl.BlockSpec((C, 9 * C), lambda g: (0, 0))

    bias = jnp.stack([b1, b2]).astype(jnp.float32).reshape(2, C, 1)

    # ---- 3x3 validity masks (kill row-wrap / cross-image / out-of-image taps) ----
    hh = jnp.arange(H)[:, None]
    ww = jnp.arange(W)[None, :]
    rows = []
    for oh in (-1, 0, 1):
        for ow in (-1, 0, 1):
            m = ((hh + oh >= 0) & (hh + oh < H) &
                 (ww + ow >= 0) & (ww + ow < W))
            rows.append(jnp.tile(m.reshape(HW), nb))
    masks = jnp.stack(rows).astype(dtype)        # (9, L)

    kernel = functools.partial(basic_block_kernel, W=W, HW=HW, nb=nb,
                               tap_streamed=tap_streamed)

    scratch_shapes = [pltpu.VMEM((C, L + 2 * (W + 1)), dtype)]   # haloed strip
    if not tap_streamed:
        scratch_shapes.append(pltpu.VMEM((9 * C, L), dtype))     # im2col

    out_flat = pl.pallas_call(
        kernel,
        out_shape=jax.ShapeDtypeStruct((N, C, HW), dtype),
        grid_spec=pltpu.PrefetchScalarGridSpec(
            num_scalar_prefetch=0,
            grid=(G,),
            in_specs=[
                pl.BlockSpec((nb, C, HW), lambda g: (g, 0, 0)),  # x block
                w1_spec,                                         # w1 (BN-folded)
                w2_spec,                                         # w2 (BN-folded)
                pl.BlockSpec((2, C, 1), lambda g: (0, 0, 0)),    # bn biases
                pl.BlockSpec((9, L), lambda g: (0, 0)),          # edge masks
            ],
            out_specs=pl.BlockSpec((nb, C, HW), lambda g: (g, 0, 0)),
            scratch_shapes=scratch_shapes,
        ),
        compiler_params=pltpu.CompilerParams(
            dimension_semantics=("parallel",),
            vmem_limit_bytes=int(vmem_limit),
        ),
    )(x_flat, w1m, w2m, bias, masks)

    return out_flat.reshape(N, C, H, W)          # free reshape


def reference_basic_block(x, w1, s1, b1, w2, s2, b2):
    """Pure-JAX reference (lax conv), NCHW / OIHW layouts."""
    dn = ("NCHW", "OIHW", "NCHW")

    def bn(t, s, b):
        return t * s[None, :, None, None] + b[None, :, None, None]

    out = jax.lax.conv_general_dilated(x, w1, (1, 1), "SAME",
                                       dimension_numbers=dn)
    out = jnp.maximum(bn(out, s1, b1), 0.0)
    out = jax.lax.conv_general_dilated(out, w2, (1, 1), "SAME",
                                       dimension_numbers=dn)
    return jnp.maximum(bn(out, s2, b2) + x, 0.0)


if __name__ == "__main__":
    # Shapes consistent with BasicBlock(inplanes=4, planes=4, stride=1).
    N, C, H, W = 2, 4, 16, 16
    eps = 1e-5

    key = jax.random.PRNGKey(0)
    (kx, kw1, kw2, kg1, kb1, km1, kv1,
     kg2, kb2, km2, kv2) = jax.random.split(key, 11)

    x = jax.random.normal(kx, (N, C, H, W), jnp.float32)
    w1 = jax.random.normal(kw1, (C, C, 3, 3), jnp.float32) * 0.1
    w2 = jax.random.normal(kw2, (C, C, 3, 3), jnp.float32) * 0.1

    gamma1 = 1.0 + 0.1 * jax.random.normal(kg1, (C,), jnp.float32)
    beta1 = 0.1 * jax.random.normal(kb1, (C,), jnp.float32)
    mean1 = 0.1 * jax.random.normal(km1, (C,), jnp.float32)
    var1 = 1.0 + 0.1 * jnp.abs(jax.random.normal(kv1, (C,), jnp.float32))
    gamma2 = 1.0 + 0.1 * jax.random.normal(kg2, (C,), jnp.float32)
    beta2 = 0.1 * jax.random.normal(kb2, (C,), jnp.float32)
    mean2 = 0.1 * jax.random.normal(km2, (C,), jnp.float32)
    var2 = 1.0 + 0.1 * jnp.abs(jax.random.normal(kv2, (C,), jnp.float32))

    # Fold inference-mode BatchNorm into scale/bias.
    s1 = gamma1 / jnp.sqrt(var1 + eps)
    b1 = beta1 - mean1 * s1
    s2 = gamma2 / jnp.sqrt(var2 + eps)
    b2 = beta2 - mean2 * s2

    ref = jax.block_until_ready(reference_basic_block(x, w1, s1, b1, w2, s2, b2))

    # Default path (auto: fused K=9C im2col matmul for C < 128).
    out_fused = jax.block_until_ready(
        basic_block_pallas(x, w1, s1, b1, w2, s2, b2))
    # Tap-streamed path (forced here for coverage; auto-selected when C >= 128).
    out_tap = jax.block_until_ready(
        basic_block_pallas(x, w1, s1, b1, w2, s2, b2, tap_streamed=True))

    assert out_fused.shape == (N, C, H, W)
    assert out_tap.shape == (N, C, H, W)
    err_fused = float(jnp.max(jnp.abs(out_fused - ref)))
    err_tap = float(jnp.max(jnp.abs(out_tap - ref)))
    assert jnp.allclose(out_fused, ref, atol=1e-4, rtol=1e-4), (
        "fused path mismatch vs reference, max abs err = %e" % err_fused)
    assert jnp.allclose(out_tap, ref, atol=1e-4, rtol=1e-4), (
        "tap-streamed path mismatch vs reference, max abs err = %e" % err_tap)

    print("KERNEL_OK")
</pallas_src>

<mosaic_0001>
module attributes {stable_mosaic.version = 11 : i64} {
  func.func @basic_block_kernel(%arg0: i32, %arg1: memref<1x4x256xf32, #tpu.memory_space<vmem>>, %arg2: memref<4x36xf32, #tpu.memory_space<vmem>>, %arg3: memref<4x36xf32, #tpu.memory_space<vmem>>, %arg4: memref<2x4x1xf32, #tpu.memory_space<vmem>>, %arg5: memref<9x256xf32, #tpu.memory_space<vmem>>, %arg6: memref<1x4x256xf32, #tpu.memory_space<vmem>>, %arg7: memref<4x290xf32, #tpu.memory_space<vmem>>, %arg8: memref<36x256xf32, #tpu.memory_space<vmem>>) attributes {dimension_semantics = [#tpu.dimension_semantics<parallel>], iteration_bounds = array<i64: 2>, scalar_prefetch = 0 : i64, scratch_operands = 2 : i64, tpu.core_type = #tpu.core_type<tc>, window_params = [{transform_indices = @transform_0, window_bounds = array<i64: 1, 4, 256>}, {pipeline_mode = #tpu.pipeline_mode<synchronous>, transform_indices = @transform_1, window_bounds = array<i64: 4, 36>}, {pipeline_mode = #tpu.pipeline_mode<synchronous>, transform_indices = @transform_2, window_bounds = array<i64: 4, 36>}, {pipeline_mode = #tpu.pipeline_mode<synchronous>, transform_indices = @transform_3, window_bounds = array<i64: 2, 4, 1>}, {pipeline_mode = #tpu.pipeline_mode<synchronous>, transform_indices = @transform_4, window_bounds = array<i64: 9, 256>}, {transform_indices = @transform_5, window_bounds = array<i64: 1, 4, 256>}]} {
    %cst = arith.constant 0.000000e+00 : f32
    %0 = vector.broadcast %cst : f32 to vector<4x17xf32>
    %c0 = arith.constant 0 : index
    %c0_0 = arith.constant 0 : index
    %1 = vector.load %arg7[%c0, %c0_0] : memref<4x290xf32, #tpu.memory_space<vmem>>, vector<4x17xf32>
    tpu.vector_store %arg7[%c0, %c0_0], %0 {strides = array<i32>} : memref<4x290xf32, #tpu.memory_space<vmem>>, vector<4x17xf32>,
    %c0_1 = arith.constant 0 : index
    %c273 = arith.constant 273 : index
    %2 = vector.load %arg7[%c0_1, %c273] : memref<4x290xf32, #tpu.memory_space<vmem>>, vector<4x17xf32>
    tpu.vector_store %arg7[%c0_1, %c273], %0 {strides = array<i32>} : memref<4x290xf32, #tpu.memory_space<vmem>>, vector<4x17xf32>,
    %c0_2 = arith.constant 0 : index
    %c0_3 = arith.constant 0 : index
    %c0_4 = arith.constant 0 : index
    %3 = vector.load %arg1[%c0_2, %c0_3, %c0_4] : memref<1x4x256xf32, #tpu.memory_space<vmem>>, vector<1x4x256xf32>
    %4 = vector.shape_cast %3 : vector<1x4x256xf32> to vector<4x256xf32>
    %c0_5 = arith.constant 0 : index
    %c17 = arith.constant 17 : index
    %5 = vector.load %arg7[%c0_5, %c17] : memref<4x290xf32, #tpu.memory_space<vmem>>, vector<4x256xf32>
    tpu.vector_store %arg7[%c0_5, %c17], %4 {strides = array<i32>} : memref<4x290xf32, #tpu.memory_space<vmem>>, vector<4x256xf32>,
    %c0_6 = arith.constant 0 : index
    %c17_7 = arith.constant 17 : index
    %6 = vector.load %arg7[%c0_6, %c17_7] : memref<4x290xf32, #tpu.memory_space<vmem>>, vector<4x256xf32>
    %c0_8 = arith.constant 0 : index
    %c0_9 = arith.constant 0 : index
    %7 = vector.load %arg7[%c0_8, %c0_9] : memref<4x290xf32, #tpu.memory_space<vmem>>, vector<4x256xf32>
    %c0_10 = arith.constant 0 : index
    %c0_11 = arith.constant 0 : index
    %8 = vector.load %arg5[%c0_10, %c0_11] : memref<9x256xf32, #tpu.memory_space<vmem>>, vector<1x256xf32>
    %9 = vector.broadcast %8 : vector<1x256xf32> to vector<4x256xf32>
    %10 = arith.mulf %7, %9 : vector<4x256xf32>
    %c0_12 = arith.constant 0 : index
    %c0_13 = arith.constant 0 : index
    %11 = vector.load %arg8[%c0_12, %c0_13] : memref<36x256xf32, #tpu.memory_space<vmem>>, vector<4x256xf32>
    tpu.vector_store %arg8[%c0_12, %c0_13], %10 {strides = array<i32>} : memref<36x256xf32, #tpu.memory_space<vmem>>, vector<4x256xf32>,
    %c0_14 = arith.constant 0 : index
    %c1 = arith.constant 1 : index
    %12 = vector.load %arg7[%c0_14, %c1] : memref<4x290xf32, #tpu.memory_space<vmem>>, vector<4x256xf32>
    %c1_15 = arith.constant 1 : index
    %c0_16 = arith.constant 0 : index
    %13 = vector.load %arg5[%c1_15, %c0_16] : memref<9x256xf32, #tpu.memory_space<vmem>>, vector<1x256xf32>
    %14 = vector.broadcast %13 : vector<1x256xf32> to vector<4x256xf32>
    %15 = arith.mulf %12, %14 : vector<4x256xf32>
    %c4 = arith.constant 4 : index
    %c0_17 = arith.constant 0 : index
    %16 = vector.load %arg8[%c4, %c0_17] : memref<36x256xf32, #tpu.memory_space<vmem>>, vector<4x256xf32>
    tpu.vector_store %arg8[%c4, %c0_17], %15 {strides = array<i32>} : memref<36x256xf32, #tpu.memory_space<vmem>>, vector<4x256xf32>,
    %c0_18 = arith.constant 0 : index
    %c2 = arith.constant 2 : index
    %17 = vector.load %arg7[%c0_18, %c2] : memref<4x290xf32, #tpu.memory_space<vmem>>, vector<4x256xf32>
    %c2_19 = arith.constant 2 : index
    %c0_20 = arith.constant 0 : index
    %18 = vector.load %arg5[%c2_19, %c0_20] : memref<9x256xf32, #tpu.memory_space<vmem>>, vector<1x256xf32>
    %19 = vector.broadcast %18 : vector<1x256xf32> to vector<4x256xf32>
    %20 = arith.mulf %17, %19 : vector<4x256xf32>
    %c8 = arith.constant 8 : index
    %c0_21 = arith.constant 0 : index
    %21 = vector.load %arg8[%c8, %c0_21] : memref<36x256xf32, #tpu.memory_space<vmem>>, vector<4x256xf32>
    tpu.vector_store %arg8[%c8, %c0_21], %20 {strides = array<i32>} : memref<36x256xf32, #tpu.memory_space<vmem>>, vector<4x256xf32>,
    %c0_22 = arith.constant 0 : index
    %c16 = arith.constant 16 : index
    %22 = vector.load %arg7[%c0_22, %c16] : memref<4x290xf32, #tpu.memory_space<vmem>>, vector<4x256xf32>
    %c3 = arith.constant 3 : index
    %c0_23 = arith.constant 0 : index
    %23 = vector.load %arg5[%c3, %c0_23] : memref<9x256xf32, #tpu.memory_space<vmem>>, vector<1x256xf32>
    %24 = vector.broadcast %23 : vector<1x256xf32> to vector<4x256xf32>
    %25 = arith.mulf %22, %24 : vector<4x256xf32>
    %c12 = arith.constant 12 : index
    %c0_24 = arith.constant 0 : index
    %26 = vector.load %arg8[%c12, %c0_24] : memref<36x256xf32, #tpu.memory_space<vmem>>, vector<4x256xf32>
    tpu.vector_store %arg8[%c12, %c0_24], %25 {strides = array<i32>} : memref<36x256xf32, #tpu.memory_space<vmem>>, vector<4x256xf32>,
    %c16_25 = arith.constant 16 : index
    %c0_26 = arith.constant 0 : index
    %27 = vector.load %arg8[%c16_25, %c0_26] : memref<36x256xf32, #tpu.memory_space<vmem>>, vector<4x256xf32>
    tpu.vector_store %arg8[%c16_25, %c0_26], %6 {strides = array<i32>} : memref<36x256xf32, #tpu.memory_space<vmem>>, vector<4x256xf32>,
    %c0_27 = arith.constant 0 : index
    %c18 = arith.constant 18 : index
    %28 = vector.load %arg7[%c0_27, %c18] : memref<4x290xf32, #tpu.memory_space<vmem>>, vector<4x256xf32>
    %c5 = arith.constant 5 : index
    %c0_28 = arith.constant 0 : index
    %29 = vector.load %arg5[%c5, %c0_28] : memref<9x256xf32, #tpu.memory_space<vmem>>, vector<1x256xf32>
    %30 = vector.broadcast %29 : vector<1x256xf32> to vector<4x256xf32>
    %31 = arith.mulf %28, %30 : vector<4x256xf32>
    %c20 = arith.constant 20 : index
    %c0_29 = arith.constant 0 : index
    %32 = vector.load %arg8[%c20, %c0_29] : memref<36x256xf32, #tpu.memory_space<vmem>>, vector<4x256xf32>
    tpu.vector_store %arg8[%c20, %c0_29], %31 {strides = array<i32>} : memref<36x256xf32, #tpu.memory_space<vmem>>, vector<4x256xf32>,
    %c0_30 = arith.constant 0 : index
    %c32 = arith.constant 32 : index
    %33 = vector.load %arg7[%c0_30, %c32] : memref<4x290xf32, #tpu.memory_space<vmem>>, vector<4x256xf32>
    %c6 = arith.constant 6 : index
    %c0_31 = arith.constant 0 : index
    %34 = vector.load %arg5[%c6, %c0_31] : memref<9x256xf32, #tpu.memory_space<vmem>>, vector<1x256xf32>
    %35 = vector.broadcast %34 : vector<1x256xf32> to vector<4x256xf32>
    %36 = arith.mulf %33, %35 : vector<4x256xf32>
    %c24 = arith.constant 24 : index
    %c0_32 = arith.constant 0 : index
    %37 = vector.load %arg8[%c24, %c0_32] : memref<36x256xf32, #tpu.memory_space<vmem>>, vector<4x256xf32>
    tpu.vector_store %arg8[%c24, %c0_32], %36 {strides = array<i32>} : memref<36x256xf32, #tpu.memory_space<vmem>>, vector<4x256xf32>,
    %c0_33 = arith.constant 0 : index
    %c33 = arith.constant 33 : index
    %38 = vector.load %arg7[%c0_33, %c33] : memref<4x290xf32, #tpu.memory_space<vmem>>, vector<4x256xf32>
    %c7 = arith.constant 7 : index
    %c0_34 = arith.constant 0 : index
    %39 = vector.load %arg5[%c7, %c0_34] : memref<9x256xf32, #tpu.memory_space<vmem>>, vector<1x256xf32>
    %40 = vector.broadcast %39 : vector<1x256xf32> to vector<4x256xf32>
    %41 = arith.mulf %38, %40 : vector<4x256xf32>
    %c28 = arith.constant 28 : index
    %c0_35 = arith.constant 0 : index
    %42 = vector.load %arg8[%c28, %c0_35] : memref<36x256xf32, #tpu.memory_space<vmem>>, vector<4x256xf32>
    tpu.vector_store %arg8[%c28, %c0_35], %41 {strides = array<i32>} : memref<36x256xf32, #tpu.memory_space<vmem>>, vector<4x256xf32>,
    %c0_36 = arith.constant 0 : index
    %c34 = arith.constant 34 : index
    %43 = vector.load %arg7[%c0_36, %c34] : memref<4x290xf32, #tpu.memory_space<vmem>>, vector<4x256xf32>
    %c8_37 = arith.constant 8 : index
    %c0_38 = arith.constant 0 : index
    %44 = vector.load %arg5[%c8_37, %c0_38] : memref<9x256xf32, #tpu.memory_space<vmem>>, vector<1x256xf32>
    %45 = vector.broadcast %44 : vector<1x256xf32> to vector<4x256xf32>
    %46 = arith.mulf %43, %45 : vector<4x256xf32>
    %c32_39 = arith.constant 32 : index
    %c0_40 = arith.constant 0 : index
    %47 = vector.load %arg8[%c32_39, %c0_40] : memref<36x256xf32, #tpu.memory_space<vmem>>, vector<4x256xf32>
    tpu.vector_store %arg8[%c32_39, %c0_40], %46 {strides = array<i32>} : memref<36x256xf32, #tpu.memory_space<vmem>>, vector<4x256xf32>,
    %c0_41 = arith.constant 0 : index
    %c0_42 = arith.constant 0 : index
    %48 = vector.load %arg2[%c0_41, %c0_42] : memref<4x36xf32, #tpu.memory_space<vmem>>, vector<4x36xf32>
    %c0_43 = arith.constant 0 : index
    %c0_44 = arith.constant 0 : index
    %49 = vector.load %arg8[%c0_43, %c0_44] : memref<36x256xf32, #tpu.memory_space<vmem>>, vector<36x256xf32>
    %cst_45 = arith.constant dense<0.000000e+00> : vector<4x256xf32>
    %50 = tpu.matmul %48, %49, %cst_45 {dimension_numbers = #tpu.dot_dimension_numbers<[1], [0], [0], [1], [0, 0, 1, 1], [], []>} : vector<4x36xf32>, vector<36x256xf32>, vector<4x256xf32> -> vector<4x256xf32>
    %c0_46 = arith.constant 0 : index
    %c0_47 = arith.constant 0 : index
    %c0_48 = arith.constant 0 : index
    %51 = vector.load %arg4[%c0_46, %c0_47, %c0_48] : memref<2x4x1xf32, #tpu.memory_space<vmem>>, vector<1x4x1xf32>
    %52 = vector.shape_cast %51 : vector<1x4x1xf32> to vector<4x1xf32>
    %53 = vector.broadcast %52 : vector<4x1xf32> to vector<4x256xf32>
    %54 = arith.addf %50, %53 : vector<4x256xf32>
    %cst_49 = arith.constant 0.000000e+00 : f32
    %55 = vector.broadcast %cst_49 : f32 to vector<4x256xf32>
    %56 = arith.maximumf %54, %55 : vector<4x256xf32>
    %c0_50 = arith.constant 0 : index
    %c17_51 = arith.constant 17 : index
    %57 = vector.load %arg7[%c0_50, %c17_51] : memref<4x290xf32, #tpu.memory_space<vmem>>, vector<4x256xf32>
    tpu.vector_store %arg7[%c0_50, %c17_51], %56 {strides = array<i32>} : memref<4x290xf32, #tpu.memory_space<vmem>>, vector<4x256xf32>,
    %c0_52 = arith.constant 0 : index
    %c0_53 = arith.constant 0 : index
    %58 = vector.load %arg7[%c0_52, %c0_53] : memref<4x290xf32, #tpu.memory_space<vmem>>, vector<4x256xf32>
    %c0_54 = arith.constant 0 : index
    %c0_55 = arith.constant 0 : index
    %59 = vector.load %arg5[%c0_54, %c0_55] : memref<9x256xf32, #tpu.memory_space<vmem>>, vector<1x256xf32>
    %60 = vector.broadcast %59 : vector<1x256xf32> to vector<4x256xf32>
    %61 = arith.mulf %58, %60 : vector<4x256xf32>
    %c0_56 = arith.constant 0 : index
    %c0_57 = arith.constant 0 : index
    %62 = vector.load %arg8[%c0_56, %c0_57] : memref<36x256xf32, #tpu.memory_space<vmem>>, vector<4x256xf32>
    tpu.vector_store %arg8[%c0_56, %c0_57], %61 {strides = array<i32>} : memref<36x256xf32, #tpu.memory_space<vmem>>, vector<4x256xf32>,
    %c0_58 = arith.constant 0 : index
    %c1_59 = arith.constant 1 : index
    %63 = vector.load %arg7[%c0_58, %c1_59] : memref<4x290xf32, #tpu.memory_space<vmem>>, vector<4x256xf32>
    %c1_60 = arith.constant 1 : index
    %c0_61 = arith.constant 0 : index
    %64 = vector.load %arg5[%c1_60, %c0_61] : memref<9x256xf32, #tpu.memory_space<vmem>>, vector<1x256xf32>
    %65 = vector.broadcast %64 : vector<1x256xf32> to vector<4x256xf32>
    %66 = arith.mulf %63, %65 : vector<4x256xf32>
    %c4_62 = arith.constant 4 : index
    %c0_63 = arith.constant 0 : index
    %67 = vector.load %arg8[%c4_62, %c0_63] : memref<36x256xf32, #tpu.memory_space<vmem>>, vector<4x256xf32>
    tpu.vector_store %arg8[%c4_62, %c0_63], %66 {strides = array<i32>} : memref<36x256xf32, #tpu.memory_space<vmem>>, vector<4x256xf32>,
    %c0_64 = arith.constant 0 : index
    %c2_65 = arith.constant 2 : index
    %68 = vector.load %arg7[%c0_64, %c2_65] : memref<4x290xf32, #tpu.memory_space<vmem>>, vector<4x256xf32>
    %c2_66 = arith.constant 2 : index
    %c0_67 = arith.constant 0 : index
    %69 = vector.load %arg5[%c2_66, %c0_67] : memref<9x256xf32, #tpu.memory_space<vmem>>, vector<1x256xf32>
    %70 = vector.broadcast %69 : vector<1x256xf32> to vector<4x256xf32>
    %71 = arith.mulf %68, %70 : vector<4x256xf32>
    %c8_68 = arith.constant 8 : index
    %c0_69 = arith.constant 0 : index
    %72 = vector.load %arg8[%c8_68, %c0_69] : memref<36x256xf32, #tpu.memory_space<vmem>>, vector<4x256xf32>
    tpu.vector_store %arg8[%c8_68, %c0_69], %71 {strides = array<i32>} : memref<36x256xf32, #tpu.memory_space<vmem>>, vector<4x256xf32>,
    %c0_70 = arith.constant 0 : index
    %c16_71 = arith.constant 16 : index
    %73 = vector.load %arg7[%c0_70, %c16_71] : memref<4x290xf32, #tpu.memory_space<vmem>>, vector<4x256xf32>
    %c3_72 = arith.constant 3 : index
    %c0_73 = arith.constant 0 : index
    %74 = vector.load %arg5[%c3_72, %c0_73] : memref<9x256xf32, #tpu.memory_space<vmem>>, vector<1x256xf32>
    %75 = vector.broadcast %74 : vector<1x256xf32> to vector<4x256xf32>
    %76 = arith.mulf %73, %75 : vector<4x256xf32>
    %c12_74 = arith.constant 12 : index
    %c0_75 = arith.constant 0 : index
    %77 = vector.load %arg8[%c12_74, %c0_75] : memref<36x256xf32, #tpu.memory_space<vmem>>, vector<4x256xf32>
    tpu.vector_store %arg8[%c12_74, %c0_75], %76 {strides = array<i32>} : memref<36x256xf32, #tpu.memory_space<vmem>>, vector<4x256xf32>,
    %c16_76 = arith.constant 16 : index
    %c0_77 = arith.constant 0 : index
    %78 = vector.load %arg8[%c16_76, %c0_77] : memref<36x256xf32, #tpu.memory_space<vmem>>, vector<4x256xf32>
    tpu.vector_store %arg8[%c16_76, %c0_77], %56 {strides = array<i32>} : memref<36x256xf32, #tpu.memory_space<vmem>>, vector<4x256xf32>,
    %c0_78 = arith.constant 0 : index
    %c18_79 = arith.constant 18 : index
    %79 = vector.load %arg7[%c0_78, %c18_79] : memref<4x290xf32, #tpu.memory_space<vmem>>, vector<4x256xf32>
    %c5_80 = arith.constant 5 : index
    %c0_81 = arith.constant 0 : index
    %80 = vector.load %arg5[%c5_80, %c0_81] : memref<9x256xf32, #tpu.memory_space<vmem>>, vector<1x256xf32>
    %81 = vector.broadcast %80 : vector<1x256xf32> to vector<4x256xf32>
    %82 = arith.mulf %79, %81 : vector<4x256xf32>
    %c20_82 = arith.constant 20 : index
    %c0_83 = arith.constant 0 : index
    %83 = vector.load %arg8[%c20_82, %c0_83] : memref<36x256xf32, #tpu.memory_space<vmem>>, vector<4x256xf32>
    tpu.vector_store %arg8[%c20_82, %c0_83], %82 {strides = array<i32>} : memref<36x256xf32, #tpu.memory_space<vmem>>, vector<4x256xf32>,
    %c0_84 = arith.constant 0 : index
    %c32_85 = arith.constant 32 : index
    %84 = vector.load %arg7[%c0_84, %c32_85] : memref<4x290xf32, #tpu.memory_space<vmem>>, vector<4x256xf32>
    %c6_86 = arith.constant 6 : index
    %c0_87 = arith.constant 0 : index
    %85 = vector.load %arg5[%c6_86, %c0_87] : memref<9x256xf32, #tpu.memory_space<vmem>>, vector<1x256xf32>
    %86 = vector.broadcast %85 : vector<1x256xf32> to vector<4x256xf32>
    %87 = arith.mulf %84, %86 : vector<4x256xf32>
    %c24_88 = arith.constant 24 : index
    %c0_89 = arith.constant 0 : index
    %88 = vector.load %arg8[%c24_88, %c0_89] : memref<36x256xf32, #tpu.memory_space<vmem>>, vector<4x256xf32>
    tpu.vector_store %arg8[%c24_88, %c0_89], %87 {strides = array<i32>} : memref<36x256xf32, #tpu.memory_space<vmem>>, vector<4x256xf32>,
    %c0_90 = arith.constant 0 : index
    %c33_91 = arith.constant 33 : index
    %89 = vector.load %arg7[%c0_90, %c33_91] : memref<4x290xf32, #tpu.memory_space<vmem>>, vector<4x256xf32>
    %c7_92 = arith.constant 7 : index
    %c0_93 = arith.constant 0 : index
    %90 = vector.load %arg5[%c7_92, %c0_93] : memref<9x256xf32, #tpu.memory_space<vmem>>, vector<1x256xf32>
    %91 = vector.broadcast %90 : vector<1x256xf32> to vector<4x256xf32>
    %92 = arith.mulf %89, %91 : vector<4x256xf32>
    %c28_94 = arith.constant 28 : index
    %c0_95 = arith.constant 0 : index
    %93 = vector.load %arg8[%c28_94, %c0_95] : memref<36x256xf32, #tpu.memory_space<vmem>>, vector<4x256xf32>
    tpu.vector_store %arg8[%c28_94, %c0_95], %92 {strides = array<i32>} : memref<36x256xf32, #tpu.memory_space<vmem>>, vector<4x256xf32>,
    %c0_96 = arith.constant 0 : index
    %c34_97 = arith.constant 34 : index
    %94 = vector.load %arg7[%c0_96, %c34_97] : memref<4x290xf32, #tpu.memory_space<vmem>>, vector<4x256xf32>
    %c8_98 = arith.constant 8 : index
    %c0_99 = arith.constant 0 : index
    %95 = vector.load %arg5[%c8_98, %c0_99] : memref<9x256xf32, #tpu.memory_space<vmem>>, vector<1x256xf32>
    %96 = vector.broadcast %95 : vector<1x256xf32> to vector<4x256xf32>
    %97 = arith.mulf %94, %96 : vector<4x256xf32>
    %c32_100 = arith.constant 32 : index
    %c0_101 = arith.constant 0 : index
    %98 = vector.load %arg8[%c32_100, %c0_101] : memref<36x256xf32, #tpu.memory_space<vmem>>, vector<4x256xf32>
    tpu.vector_store %arg8[%c32_100, %c0_101], %97 {strides = array<i32>} : memref<36x256xf32, #tpu.memory_space<vmem>>, vector<4x256xf32>,
    %c0_102 = arith.constant 0 : index
    %c0_103 = arith.constant 0 : index
    %99 = vector.load %arg3[%c0_102, %c0_103] : memref<4x36xf32, #tpu.memory_space<vmem>>, vector<4x36xf32>
    %c0_104 = arith.constant 0 : index
    %c0_105 = arith.constant 0 : index
    %100 = vector.load %arg8[%c0_104, %c0_105] : memref<36x256xf32, #tpu.memory_space<vmem>>, vector<36x256xf32>
    %cst_106 = arith.constant dense<0.000000e+00> : vector<4x256xf32>
    %101 = tpu.matmul %99, %100, %cst_106 {dimension_numbers = #tpu.dot_dimension_numbers<[1], [0], [0], [1], [0, 0, 1, 1], [], []>} : vector<4x36xf32>, vector<36x256xf32>, vector<4x256xf32> -> vector<4x256xf32>
    %c1_107 = arith.constant 1 : index
    %c0_108 = arith.constant 0 : index
    %c0_109 = arith.constant 0 : index
    %102 = vector.load %arg4[%c1_107, %c0_108, %c0_109] : memref<2x4x1xf32, #tpu.memory_space<vmem>>, vector<1x4x1xf32>
    %103 = vector.shape_cast %102 : vector<1x4x1xf32> to vector<4x1xf32>
    %104 = vector.broadcast %103 : vector<4x1xf32> to vector<4x256xf32>
    %105 = arith.addf %101, %104 : vector<4x256xf32>
    %106 = arith.addf %105, %6 : vector<4x256xf32>
    %cst_110 = arith.constant 0.000000e+00 : f32
    %107 = vector.broadcast %cst_110 : f32 to vector<4x256xf32>
    %108 = arith.maximumf %106, %107 : vector<4x256xf32>
    %c0_111 = arith.constant 0 : index
    %c0_112 = arith.constant 0 : index
    %c0_113 = arith.constant 0 : index
    %109 = vector.load %arg6[%c0_111, %c0_112, %c0_113] : memref<1x4x256xf32, #tpu.memory_space<vmem>>, vector<1x4x256xf32>
    %110 = vector.shape_cast %109 : vector<1x4x256xf32> to vector<4x256xf32>
    %111 = vector.shape_cast %108 : vector<4x256xf32> to vector<1x4x256xf32>
    tpu.vector_store %arg6[%c0_111, %c0_112, %c0_113], %111 {strides = array<i32>} : memref<1x4x256xf32, #tpu.memory_space<vmem>>, vector<1x4x256xf32>,
    return
  }
  func.func @transform_0(%arg0: i32) -> (i32, i32, i32) {
    %c0_i32 = arith.constant 0 : i32
    %c0_i32_0 = arith.constant 0 : i32
    %c0_i32_1 = arith.constant 0 : i32
    return %arg0, %c0_i32, %c0_i32_0 : i32, i32, i32
  }
  func.func @transform_1(%arg0: i32) -> (i32, i32) {
    %c0_i32 = arith.constant 0 : i32
    %c0_i32_0 = arith.constant 0 : i32
    %c0_i32_1 = arith.constant 0 : i32
    return %c0_i32, %c0_i32_0 : i32, i32
  }
  func.func @transform_2(%arg0: i32) -> (i32, i32) {
    %c0_i32 = arith.constant 0 : i32
    %c0_i32_0 = arith.constant 0 : i32
    %c0_i32_1 = arith.constant 0 : i32
    return %c0_i32, %c0_i32_0 : i32, i32
  }
  func.func @transform_3(%arg0: i32) -> (i32, i32, i32) {
    %c0_i32 = arith.constant 0 : i32
    %c0_i32_0 = arith.constant 0 : i32
    %c0_i32_1 = arith.constant 0 : i32
    %c0_i32_2 = arith.constant 0 : i32
    return %c0_i32, %c0_i32_0, %c0_i32_1 : i32, i32, i32
  }
  func.func @transform_4(%arg0: i32) -> (i32, i32) {
    %c0_i32 = arith.constant 0 : i32
    %c0_i32_0 = arith.constant 0 : i32
    %c0_i32_1 = arith.constant 0 : i32
    return %c0_i32, %c0_i32_0 : i32, i32
  }
  func.func @transform_5(%arg0: i32) -> (i32, i32, i32) {
    %c0_i32 = arith.constant 0 : i32
    %c0_i32_0 = arith.constant 0 : i32
    %c0_i32_1 = arith.constant 0 : i32
    return %arg0, %c0_i32, %c0_i32_0 : i32, i32, i32
  }
}

</mosaic_0001>

<llo_original>
// kernel: tpu_custom_call.1
$region0: #{tpu_custom_call.1}
  #allocation0 [shape = 'u32[]', space=smem, size = 0x4, offset = 0x4, fixed_abs, tag = 'smem constant byte address 0x4 - core index']
  #allocation1 [shape = 'u32[72,128]{1,0:T(1,128)}', space=vmem, size = 0x9000, scoped, tag = 'internal scratch']
  #allocation2 [shape = 'f32[4,290]{1,0:T(4,128)}', space=vmem, size = 0x1800, scoped, tag = 'scratch operand']
  #allocation3 [shape = 'f32[36,256]{1,0:T(8,128)}', space=vmem, size = 0xa000, scoped, tag = 'scratch operand']
  %s0 = inlined_call_operand.hbm [shape: f32[2,4,256], index: 0, kind: input, shape index: {}]
  %s1 = inlined_call_operand.vmem [shape: f32[4,36], index: 1, kind: input, shape index: {}]
  %s2 = inlined_call_operand.vmem [shape: f32[4,36], index: 2, kind: input, shape index: {}]
  %s3 = inlined_call_operand.vmem [shape: f32[2,4,1], index: 3, kind: input, shape index: {}]
  %s4 = inlined_call_operand.hbm [shape: f32[9,256], index: 4, kind: input, shape index: {}]
  %s5 = inlined_call_operand.hbm [shape: f32[2,4,256], index: 5, kind: output, shape index: {}]
  %s6 = sld [smem:[#allocation0]]
  $region61: #{tpu_custom_call.1} parent=0
    _
  %s8 = ssub.s32 1, %s6
  %s9 = scalar_select 0, %s8, %s6
  $region1: #{tpu_custom_call.1} parent=0
    #allocation4 [shape = 'u8[8192]{0}', space=vmem, size = 0x2000, scoped, tag = 'input window, operand 0']
    #allocation5 [shape = 's32[2]{0}', space=sflag, size = 0x8, scoped, tag = 'scoped memory for tpu_custom_call.1']
    #allocation6 [shape = 's32[2]{0}', space=sflag, size = 0x8, scoped, tag = 'scoped memory for tpu_custom_call.1']
    #allocation7 [shape = 'u8[16384]{0}', space=vmem, size = 0x4000, scoped, tag = 'input window, operand 4, single buffered']
    #allocation8 [shape = 's32[1]{0}', space=sflag, size = 0x4, scoped, tag = 'scoped memory for tpu_custom_call.1']
    #allocation9 [shape = 'u8[8192]{0}', space=vmem, size = 0x2000, scoped, tag = 'output window, operand 0']
    %10 = vsyncpa [#allocation5], 0
    %s11 = scalar_lea.sflag [#allocation5], 1
    %12 = vsyncpa %s11, 0
    %13 = vsyncpa [#allocation8], 0
    %14 = vsyncpa [#allocation6], 0
    %s15 = scalar_lea.sflag [#allocation6], 1
    %16 = vsyncpa %s15, 0
    loop: start=0, step=1, limit=4
    $region2: #{tpu_custom_call.1} parent=1 // loop_pre_header
      _
    $region3: #{tpu_custom_call.1} parent=1 // loop_header
      %s18 = sphi 0, %s22
      %p19 = scmp.ge.s32.totalorder %s18, 4
      %s28 = sphi 0, %s30
      %s31 = sphi 0, %s28
      %s32 = sphi 0, %s31
      %s48 = sphi 0, %s32
      %s52 = sphi 0, %s52
      %s54 = sphi 0, %s52
      %s55 = sphi 0, %s54
      %s69 = sphi 0, %s55
      %s73 = sphi 0, %s73
      %s75 = sphi 0, %s73
      %s76 = sphi 0, %s75
      %s90 = sphi 0, %s76
      %s94 = sphi 0, %s94
      %s96 = sphi 0, %s94
      %s97 = sphi 0, %s96
      %s111 = sphi 0, %s97
      %s115 = sphi 0, %s115
      %s117 = sphi 0, %s115
      %s118 = sphi 0, %s117
      %s132 = sphi 0, %s118
      %s138 = sphi 0, %s140
      %s141 = sphi 0, %s138
      %s142 = sphi 0, %s141
      %s158 = sphi 0, %s142
    $region4: #{tpu_custom_call.1} parent=1 // loop_header_branch
      %21 = sbr.rel (%p19) target = $region8
    $region5: #{tpu_custom_call.1} parent=1 // loop_body
      %s23 = ssub.s32 %s18, 1
      %s24 = ssub.s32 %s18, 2
      %s25 = sadd.s32 %s18, 1
      %s26 = ssub.s32 %s18, %s25
      %p27 = scmp.eq.s32.totalorder %s26, 0
      %s29 = sadd.s32 %s28, 1
      %s30 = scalar_select %p27, %s28, %s29
      %p33 = pneg %p27
      %p34 = scmp.eq.s32.totalorder %s18, 1
      %p35 = por %p33, %p34
      %p36 = scmp.ne.s32.totalorder %s28, %s31
      %p37 = scmp.eq.s32.totalorder %s18, 0
      %p38 = por %p36, %p37
      %p39 = scmp.ne.s32.totalorder %s28, %s31
      %p40 = scmp.eq.s32.totalorder %s23, 1
      %p41 = por %p39, %p40
      %p42 = scmp.ne.s32.totalorder %s31, %s32
      %p43 = scmp.eq.s32.totalorder %s23, 0
      %p44 = por %p42, %p43
      %p45 = scmp.ne.s32.totalorder %s31, %s32
      %p46 = scmp.eq.s32.totalorder %s24, 1
      %p47 = por %p45, %p46
      %p49 = scmp.ne.s32.totalorder %s32, %s48
      %p50 = scmp.eq.s32.totalorder %s24, 0
      %p51 = por %p49, %p50
      %s53 = sadd.s32 %s52, 1
      %p56 = scmp.eq.s32.totalorder %s18, 1
      %p57 = scmp.ne.s32.totalorder %s52, %s54
      %p58 = scmp.eq.s32.totalorder %s18, 0
      %p59 = por %p57, %p58
      %p60 = scmp.ne.s32.totalorder %s52, %s54
      %p61 = scmp.eq.s32.totalorder %s23, 1
      %p62 = por %p60, %p61
      %p63 = scmp.ne.s32.totalorder %s54, %s55
      %p64 = scmp.eq.s32.totalorder %s23, 0
      %p65 = por %p63, %p64
      %p66 = scmp.ne.s32.totalorder %s54, %s55
      %p67 = scmp.eq.s32.totalorder %s24, 1
      %p68 = por %p66, %p67
      %p70 = scmp.ne.s32.totalorder %s55, %s69
      %p71 = scmp.eq.s32.totalorder %s24, 0
      %p72 = por %p70, %p71
      %s74 = sadd.s32 %s73, 1
      %p77 = scmp.eq.s32.totalorder %s18, 1
      %p78 = scmp.ne.s32.totalorder %s73, %s75
      %p79 = scmp.eq.s32.totalorder %s18, 0
      %p80 = por %p78, %p79
      %p81 = scmp.ne.s32.totalorder %s73, %s75
      %p82 = scmp.eq.s32.totalorder %s23, 1
      %p83 = por %p81, %p82
      %p84 = scmp.ne.s32.totalorder %s75, %s76
      %p85 = scmp.eq.s32.totalorder %s23, 0
      %p86 = por %p84, %p85
      %p87 = scmp.ne.s32.totalorder %s75, %s76
      %p88 = scmp.eq.s32.totalorder %s24, 1
      %p89 = por %p87, %p88
      %p91 = scmp.ne.s32.totalorder %s76, %s90
      %p92 = scmp.eq.s32.totalorder %s24, 0
      %p93 = por %p91, %p92
      %s95 = sadd.s32 %s94, 1
      %p98 = scmp.eq.s32.totalorder %s18, 1
      %p99 = scmp.ne.s32.totalorder %s94, %s96
      %p100 = scmp.eq.s32.totalorder %s18, 0
      %p101 = por %p99, %p100
      %p102 = scmp.ne.s32.totalorder %s94, %s96
      %p103 = scmp.eq.s32.totalorder %s23, 1
      %p104 = por %p102, %p103
      %p105 = scmp.ne.s32.totalorder %s96, %s97
      %p106 = scmp.eq.s32.totalorder %s23, 0
      %p107 = por %p105, %p106
      %p108 = scmp.ne.s32.totalorder %s96, %s97
      %p109 = scmp.eq.s32.totalorder %s24, 1
      %p110 = por %p108, %p109
      %p112 = scmp.ne.s32.totalorder %s97, %s111
      %p113 = scmp.eq.s32.totalorder %s24, 0
      %p114 = por %p112, %p113
      %s116 = sadd.s32 %s115, 1
      %p119 = scmp.eq.s32.totalorder %s18, 1
      %p120 = scmp.ne.s32.totalorder %s115, %s117
      %p121 = scmp.eq.s32.totalorder %s18, 0
      %p122 = por %p120, %p121
      %p123 = scmp.ne.s32.totalorder %s115, %s117
      %p124 = scmp.eq.s32.totalorder %s23, 1
      %p125 = por %p123, %p124
      %p126 = scmp.ne.s32.totalorder %s117, %s118
      %p127 = scmp.eq.s32.totalorder %s23, 0
      %p128 = por %p126, %p127
      %p129 = scmp.ne.s32.totalorder %s117, %s118
      %p130 = scmp.eq.s32.totalorder %s24, 1
      %p131 = por %p129, %p130
      %p133 = scmp.ne.s32.totalorder %s118, %s132
      %p134 = scmp.eq.s32.totalorder %s24, 0
      %p135 = por %p133, %p134
      %s136 = ssub.s32 %s18, %s25
      %p137 = scmp.eq.s32.totalorder %s136, 0
      %s139 = sadd.s32 %s138, 1
      %s140 = scalar_select %p137, %s138, %s139
      %p143 = pneg %p137
      %p144 = scmp.eq.s32.totalorder %s18, 1
      %p145 = por %p143, %p144
      %p146 = scmp.ne.s32.totalorder %s138, %s141
      %p147 = scmp.eq.s32.totalorder %s18, 0
      %p148 = por %p146, %p147
      %p149 = scmp.ne.s32.totalorder %s138, %s141
      %p150 = scmp.eq.s32.totalorder %s23, 1
      %p151 = por %p149, %p150
      %p152 = scmp.ne.s32.totalorder %s141, %s142
      %p153 = scmp.eq.s32.totalorder %s23, 0
      %p154 = por %p152, %p153
      %p155 = scmp.ne.s32.totalorder %s141, %s142
      %p156 = scmp.eq.s32.totalorder %s24, 1
      %p157 = por %p155, %p156
      %p159 = scmp.ne.s32.totalorder %s142, %s158
      %p160 = scmp.eq.s32.totalorder %s24, 0
      %p161 = por %p159, %p160
      %p162 = scmp.le.s32.totalorder 1, %s18
      %p163 = scmp.lt.s32.totalorder %s18, 3
      %p164 = pnand %p162, %p163
      %p165 = pneg %p164
      // Predicated region
      $region9: #{tpu_custom_call.1} parent=5 // pred_check
        _
      $region10: #{tpu_custom_call.1} parent=5 // pred_check_branch
        %167 = sbr.rel (%p164) target = $region12
      $region11: #{tpu_custom_call.1} parent=5 // pred_region
        %s168 = ssub.s32 %s18, 1
        // Predicated region
        $region13: #{tpu_custom_call.1} parent=11 // pred_check
          %p169 = pneg %p65
        $region14: #{tpu_custom_call.1} parent=11 // pred_check_branch
          %171 = sbr.rel (%p169) target = $region16
        $region15: #{tpu_custom_call.1} parent=11 // pred_region
          _
        $region16: #{tpu_custom_call.1} parent=11 // pred_fallthru
          _
        // Predicated region
        $region17: #{tpu_custom_call.1} parent=11 // pred_check
          %p172 = pneg %p86
        $region18: #{tpu_custom_call.1} parent=11 // pred_check_branch
          %174 = sbr.rel (%p172) target = $region20
        $region19: #{tpu_custom_call.1} parent=11 // pred_region
          _
        $region20: #{tpu_custom_call.1} parent=11 // pred_fallthru
          _
        // Predicated region
        $region21: #{tpu_custom_call.1} parent=11 // pred_check
          %p175 = pneg %p107
        $region22: #{tpu_custom_call.1} parent=11 // pred_check_branch
          %177 = sbr.rel (%p175) target = $region24
        $region23: #{tpu_custom_call.1} parent=11 // pred_region
          _
        $region24: #{tpu_custom_call.1} parent=11 // pred_fallthru
          _
        // Predicated region
        $region25: #{tpu_custom_call.1} parent=11 // pred_check
          %p178 = pneg %p128
        $region26: #{tpu_custom_call.1} parent=11 // pred_check_branch
          %180 = sbr.rel (%p178) target = $region28
        $region27: #{tpu_custom_call.1} parent=11 // pred_region
          %182 = vsyncadd [#allocation8], 0
          %s183 = sshll.u32 %s4, 4
          %s184 = int_to_ptr.hbm [resolvable:$true] %s183
          %s185 = sshll.u32 [#allocation7], 4
          %s186 = int_to_ptr.vmem [resolvable:$true] %s185
          %191 = dma.hbm_to_vmem [thread:$0]  %s184, 512, %s186, [#allocation8], 256, 256, 16
        $region28: #{tpu_custom_call.1} parent=11 // pred_fallthru
          _
      $region12: #{tpu_custom_call.1} parent=5 // pred_fallthru
        _
      %p192 = scmp.lt.s32.totalorder %s18, 2
      // Predicated region
      $region29: #{tpu_custom_call.1} parent=5 // pred_check
        %p193 = pneg %p192
      $region30: #{tpu_custom_call.1} parent=5 // pred_check_branch
        %195 = sbr.rel (%p193) target = $region32
      $region31: #{tpu_custom_call.1} parent=5 // pred_region
        // Predicated region
        $region33: #{tpu_custom_call.1} parent=31 // pred_check
          %p196 = pneg %p38
        $region34: #{tpu_custom_call.1} parent=31 // pred_check_branch
          %198 = sbr.rel (%p196) target = $region36
        $region35: #{tpu_custom_call.1} parent=31 // pred_region
          %s199 = sand.u32 %s28, 1
          %s200 = scalar_lea.sflag [#allocation5], %s199
          %s201 = sand.u32 %s28, 1
          %s202 = smul.addr %s201, 8
          %s203 = scalar_lea.vmem [#allocation4], %s202
          %205 = vsyncadd %s200, 0
          %s206 = smul.addr %s18, 2
          %s207 = smul.addr %s206, 4
          %s208 = scalar_lea.hbm %s0, %s207
          %s210 = sshll.u32 %s208, 4
          %s211 = int_to_ptr.hbm [resolvable:$true] %s210
          %s212 = sshll.u32 %s203, 4
          %s213 = int_to_ptr.vmem [resolvable:$true] %s212
          %215 = dma.hbm_to_vmem [thread:$0]  %s211, 128, %s213, %s200
        $region36: #{tpu_custom_call.1} parent=31 // pred_fallthru
          _
      $region32: #{tpu_custom_call.1} parent=5 // pred_fallthru
        _
      %p216 = scmp.le.s32.totalorder 1, %s18
      %p217 = scmp.lt.s32.totalorder %s18, 3
      %p218 = pnand %p216, %p217
      %p219 = pneg %p218
      // Predicated region
      $region37: #{tpu_custom_call.1} parent=5 // pred_check
        _
      $region38: #{tpu_custom_call.1} parent=5 // pred_check_branch
        %221 = sbr.rel (%p218) target = $region40
      $region39: #{tpu_custom_call.1} parent=5 // pred_region
        %s222 = ssub.s32 %s18, 1
        %s223 = sand.u32 %s31, 1
        %s224 = scalar_lea.sflag [#allocation5], %s223
        %s225 = sand.u32 %s31, 1
        %s226 = smul.addr %s225, 8
        %s227 = scalar_lea.vmem [#allocation4], %s226
        // Predicated region
        $region41: #{tpu_custom_call.1} parent=39 // pred_check
          %p228 = pneg %p44
        $region42: #{tpu_custom_call.1} parent=39 // pred_check_branch
          %230 = sbr.rel (%p228) target = $region44
        $region43: #{tpu_custom_call.1} parent=39 // pred_region
          %232 = dma.done %s224, 128
        $region44: #{tpu_custom_call.1} parent=39 // pred_fallthru
          _
        // Predicated region
        $region45: #{tpu_custom_call.1} parent=39 // pred_check
          %p233 = pneg %p128
        $region46: #{tpu_custom_call.1} parent=39 // pred_check_branch
          %235 = sbr.rel (%p233) target = $region48
        $region47: #{tpu_custom_call.1} parent=39 // pred_region
          %237 = dma.done [#allocation8], 512
        $region48: #{tpu_custom_call.1} parent=39 // pred_fallthru
          _
        %s238 = sand.u32 %s31, 1
        %s239 = scalar_lea.sflag [#allocation5], %s238
        %s240 = sand.u32 %s31, 1
        %s241 = smul.addr %s240, 8
        %s242 = scalar_lea.vmem [#allocation4], %s241
        %p243 = pneg %p44
        %p244 = pneg %p41
        %p245 = pneg %p65
        %p246 = pneg %p62
        %p247 = pneg %p86
        %p248 = pneg %p83
        %p249 = pneg %p107
        %p250 = pneg %p104
        %p251 = pneg %p128
        %p252 = pneg %p125
        %p253 = pneg %p154
        %p254 = pneg %p151
        %s255 = sand.u32 %s141, 1
        %s256 = scalar_lea.sflag [#allocation6], %s255
        %s257 = sand.u32 %s141, 1
        %s258 = smul.addr %s257, 8
        %s259 = scalar_lea.vmem [#allocation9], %s258
        %vm260 = vcmask 134144
        %261 = vst.msk [vmem:[#allocation2] sm:$0xf] %vm260, 0.0
        %vm262 = vcmask 273544
        %263 = vst.msk [vmem:[#allocation2 + $0x8] sm:$0xf] %vm262, 0.0
        %v264 = vld [vmem:[%s227] sm:$0xff]
        %266 = vrot.lane.b32.xlu0 %v264, 17
        %v267 = vpop.permute.xlu0 %266
        %v268 = vrot.slane %v267, 4
        %vm269 = vcmask 138240
        %v270 = vsel %vm269, %v268, %v267
        %vm273 = vcmask 1043592
        %vm274 = vcmask 1047556
        %vm275 = vmor %vm274, %vm273
        %276 = vst.msk [vmem:[#allocation2] sm:$0xff] %vm275, %v270
        %277 = vst.msk [vmem:[#allocation2 + $0x8] sm:$0xf] %vm260, %v268
        %v278 = vld [vmem:[#allocation2] sm:$0xff]
        %v279 = vld [vmem:[#allocation2 + $0x8] sm:$0xf]
        %v280 = vld [vmem:[#allocation7] ss:$8 sm:$0x3]
        %v282 = vperm.slane %v280, 0
        %v283 = vperm.slane %v280, 1
        %v284 = vrot.slane %v283, 4
        %vm285 = vcmask 1043456
        %v286 = vsel %vm285, %v282, %v284
        %v288 = vmul.f32 %v278, %v286
        %290 = vst [vmem:[#allocation1] ss:$2 sm:$0xff] %v288
        %v291 = vld.sshfl [vmem:[#allocation1] sm:$0xff pattern:$0x75316420]
        %v292 = vld.sshfl [vmem:[#allocation1 + $0x8] sm:$0xff pattern:$0x75316420]
        %295 = vst [vmem:[#allocation3] sm:$0xf] %v291
        %296 = vst [vmem:[#allocation3 + $0x8] sm:$0xf] %v292
        %v297 = vld [vmem:[#allocation2] sm:$0xff]
        %v298 = vld [vmem:[#allocation2 + $0x8] sm:$0xf]
        %s299 = scalar_lea.vmem [#allocation7], 1
        %v300 = vld [vmem:[%s299] ss:$8 sm:$0x3]
        %v302 = vperm.slane %v300, 0
        %v303 = vperm.slane %v300, 1
        %v304 = vrot.slane %v303, 4
        %v305 = vsel %vm285, %v302, %v304
        %306 = vrot.lane.b32.xlu0 %v305, 1
        %v307 = vpop.permute.xlu0 %306
        %v308 = vrot.slane %v307, 4
        %vm309 = vcmask 7168
        %v310 = vsel %vm309, %v308, %v307
        %v313 = vmul.f32 %v297, %v310
        %v314 = vmul.f32 %v298, %v308
        %s317 = scalar_lea.vmem [#allocation1], 1
        %318 = vst [vmem:[%s317] ss:$2 sm:$0xff] %v313
        %s319 = scalar_lea.vmem [#allocation1], 17
        %320 = vst [vmem:[%s319] ss:$2 sm:$0xff] %v314
        %v321 = vld.sshfl [vmem:[#allocation1] sm:$0xff pattern:$0x75316420]
        %v322 = vld.sshfl [vmem:[#allocation1 + $0x8] sm:$0xff pattern:$0x75316420]
        %v323 = vld.sshfl [vmem:[#allocation1 + $0x10] sm:$0xff pattern:$0x75316420]
        %324 = vrot.lane.b32.xlu0 %v321, 127
        %v325 = vpop.permute.xlu0 %324
        %326 = vrot.lane.b32.xlu0 %v322, 127
        %v327 = vpop.permute.xlu0 %326
        %328 = vrot.lane.b32.xlu0 %v323, 127
        %v329 = vpop.permute.xlu0 %328
        %vm330 = vcmask 1039360
        %v331 = vsel %vm330, %v325, %v327
        %v332 = vsel %vm330, %v327, %v329
        %335 = vst [vmem:[#allocation3] sm:$0xf0] %v331
        %336 = vst [vmem:[#allocation3 + $0x8] sm:$0xf0] %v332
        %v337 = vld [vmem:[#allocation2] sm:$0xff]
        %v338 = vld [vmem:[#allocation2 + $0x8] sm:$0xf]
        %s339 = scalar_lea.vmem [#allocation7], 2
        %v340 = vld [vmem:[%s339] ss:$8 sm:$0x3]
        %v342 = vperm.slane %v340, 0
        %v343 = vperm.slane %v340, 1
        %v344 = vrot.slane %v343, 4
        %v345 = vsel %vm285, %v342, %v344
        %346 = vrot.lane.b32.xlu0 %v345, 2
        %v347 = vpop.permute.xlu0 %346
        %v348 = vrot.slane %v347, 4
        %vm349 = vcmask 15360
        %v350 = vsel %vm349, %v348, %v347
        %v353 = vmul.f32 %v337, %v350
        %v354 = vmul.f32 %v338, %v348
        %357 = vst [vmem:[#allocation1] ss:$2 sm:$0xff] %v353
        %s358 = scalar_lea.vmem [#allocation1], 16
        %359 = vst [vmem:[%s358] ss:$2 sm:$0xff] %v354
        %v360 = vld.sshfl [vmem:[#allocation1] sm:$0xff pattern:$0x75316420]
        %v361 = vld.sshfl [vmem:[#allocation1 + $0x8] sm:$0xff pattern:$0x75316420]
        %v362 = vld.sshfl [vmem:[#allocation1 + $0x10] sm:$0xff pattern:$0x75316420]
        %363 = vrot.lane.b32.xlu0 %v360, 126
        %v364 = vpop.permute.xlu0 %363
        %365 = vrot.lane.b32.xlu0 %v361, 126
        %v366 = vpop.permute.xlu0 %365
        %367 = vrot.lane.b32.xlu0 %v362, 126
        %v368 = vpop.permute.xlu0 %367
        %vm369 = vcmask 1031168
        %v370 = vsel %vm369, %v364, %v366
        %v371 = vsel %vm369, %v366, %v368
        %374 = vst [vmem:[#allocation3 + $0x10] sm:$0xf] %v370
        %375 = vst [vmem:[#allocation3 + $0x18] sm:$0xf] %v371
        %v376 = vld [vmem:[#allocation2] sm:$0xff]
        %v377 = vld [vmem:[#allocation2 + $0x8] sm:$0xf]
        %s378 = scalar_lea.vmem [#allocation7], 3
        %v379 = vld [vmem:[%s378] ss:$8 sm:$0x3]
        %v381 = vperm.slane %v379, 0
        %v382 = vperm.slane %v379, 1
        %v383 = vrot.slane %v382, 4
        %v384 = vsel %vm285, %v381, %v383
        %385 = vrot.lane.b32.xlu0 %v384, 16
        %v386 = vpop.permute.xlu0 %385
        %v387 = vrot.slane %v386, 4
        %vm388 = vcmask 130048
        %v389 = vsel %vm388, %v387, %v386
        %v392 = vmul.f32 %v376, %v389
        %v393 = vmul.f32 %v377, %v387
        %s396 = scalar_lea.vmem [#allocation1], 1
        %397 = vst [vmem:[%s396] ss:$2 sm:$0xff] %v392
        %s398 = scalar_lea.vmem [#allocation1], 17
        %399 = vst [vmem:[%s398] ss:$2 sm:$0xff] %v393
        %v400 = vld.sshfl [vmem:[#allocation1] sm:$0xff pattern:$0x75316420]
        %v401 = vld.sshfl [vmem:[#allocation1 + $0x8] sm:$0xff pattern:$0x75316420]
        %v402 = vld.sshfl [vmem:[#allocation1 + $0x10] sm:$0xff pattern:$0x75316420]
        %403 = vrot.lane.b32.xlu0 %v400, 112
        %v404 = vpop.permute.xlu0 %403
        %405 = vrot.lane.b32.xlu0 %v401, 112
        %v406 = vpop.permute.xlu0 %405
        %407 = vrot.lane.b32.xlu0 %v402, 112
        %v408 = vpop.permute.xlu0 %407
        %vm409 = vcmask 916480
        %v410 = vsel %vm409, %v404, %v406
        %v411 = vsel %vm409, %v406, %v408
        %414 = vst [vmem:[#allocation3 + $0x10] sm:$0xf0] %v410
        %415 = vst [vmem:[#allocation3 + $0x18] sm:$0xf0] %v411
        %418 = vst [vmem:[#allocation1] ss:$2 sm:$0xff] %v278
        %s419 = scalar_lea.vmem [#allocation1], 16
        %420 = vst [vmem:[%s419] ss:$2 sm:$0xff] %v279
        %v421 = vld.sshfl [vmem:[#allocation1] sm:$0xff pattern:$0x75316420]
        %v422 = vld.sshfl [vmem:[#allocation1 + $0x8] sm:$0xff pattern:$0x75316420]
        %v423 = vld.sshfl [vmem:[#allocation1 + $0x10] sm:$0xff pattern:$0x75316420]
        %424 = vrot.lane.b32.xlu0 %v421, 111
        %v425 = vpop.permute.xlu0 %424
        %426 = vrot.lane.b32.xlu0 %v422, 111
        %v427 = vpop.permute.xlu0 %426
        %428 = vrot.lane.b32.xlu0 %v423, 111
        %v429 = vpop.permute.xlu0 %428
        %vm430 = vcmask 908288
        %v431 = vsel %vm430, %v425, %v427
        %v432 = vsel %vm430, %v427, %v429
        %435 = vst [vmem:[#allocation3 + $0x20] sm:$0xf] %v431
        %436 = vst [vmem:[#allocation3 + $0x28] sm:$0xf] %v432
        %v437 = vld [vmem:[#allocation2] sm:$0xff]
        %v438 = vld [vmem:[#allocation2 + $0x8] sm:$0xf]
        %s439 = scalar_lea.vmem [#allocation7], 5
        %v440 = vld [vmem:[%s439] ss:$8 sm:$0x3]
        %v442 = vperm.slane %v440, 0
        %v443 = vperm.slane %v440, 1
        %v444 = vrot.slane %v443, 4
        %v445 = vsel %vm285, %v442, %v444
        %446 = vrot.lane.b32.xlu0 %v445, 18
        %v447 = vpop.permute.xlu0 %446
        %v448 = vrot.slane %v447, 4
        %vm449 = vcmask 146432
        %v450 = vsel %vm449, %v448, %v447
        %v453 = vmul.f32 %v437, %v450
        %v454 = vmul.f32 %v438, %v448
        %s457 = scalar_lea.vmem [#allocation1], 1
        %458 = vst [vmem:[%s457] ss:$2 sm:$0xff] %v453
        %s459 = scalar_lea.vmem [#allocation1], 17
        %460 = vst [vmem:[%s459] ss:$2 sm:$0xff] %v454
        %v461 = vld.sshfl [vmem:[#allocation1] sm:$0xff pattern:$0x75316420]
        %v462 = vld.sshfl [vmem:[#allocation1 + $0x8] sm:$0xff pattern:$0x75316420]
        %v463 = vld.sshfl [vmem:[#allocation1 + $0x10] sm:$0xff pattern:$0x75316420]
        %464 = vrot.lane.b32.xlu0 %v461, 110
        %v465 = vpop.permute.xlu0 %464
        %466 = vrot.lane.b32.xlu0 %v462, 110
        %v467 = vpop.permute.xlu0 %466
        %468 = vrot.lane.b32.xlu0 %v463, 110
        %v469 = vpop.permute.xlu0 %468
        %vm470 = vcmask 900096
        %v471 = vsel %vm470, %v465, %v467
        %v472 = vsel %vm470, %v467, %v469
        %475 = vst [vmem:[#allocation3 + $0x20] sm:$0xf0] %v471
        %476 = vst [vmem:[#allocation3 + $0x28] sm:$0xf0] %v472
        %v477 = vld [vmem:[#allocation2] sm:$0xff]
        %v478 = vld [vmem:[#allocation2 + $0x8] sm:$0xf]
        %s479 = scalar_lea.vmem [#allocation7], 6
        %v480 = vld [vmem:[%s479] ss:$8 sm:$0x3]
        %v482 = vperm.slane %v480, 0
        %v483 = vperm.slane %v480, 1
        %v484 = vrot.slane %v483, 4
        %v485 = vsel %vm285, %v482, %v484
        %486 = vrot.lane.b32.xlu0 %v485, 32
        %v487 = vpop.permute.xlu0 %486
        %v488 = vrot.slane %v487, 4
        %vm489 = vcmask 261120
        %v490 = vsel %vm489, %v488, %v487
        %v493 = vmul.f32 %v477, %v490
        %v494 = vmul.f32 %v478, %v488
        %497 = vst [vmem:[#allocation1] ss:$2 sm:$0xff] %v493
        %s498 = scalar_lea.vmem [#allocation1], 16
        %499 = vst [vmem:[%s498] ss:$2 sm:$0xff] %v494
        %v500 = vld.sshfl [vmem:[#allocation1] sm:$0xff pattern:$0x75316420]
        %v501 = vld.sshfl [vmem:[#allocation1 + $0x8] sm:$0xff pattern:$0x75316420]
        %v502 = vld.sshfl [vmem:[#allocation1 + $0x10] sm:$0xff pattern:$0x75316420]
        %503 = vrot.lane.b32.xlu0 %v500, 96
        %v504 = vpop.permute.xlu0 %503
        %505 = vrot.lane.b32.xlu0 %v501, 96
        %v506 = vpop.permute.xlu0 %505
        %507 = vrot.lane.b32.xlu0 %v502, 96
        %v508 = vpop.permute.xlu0 %507
        %vm509 = vcmask 785408
        %v510 = vsel %vm509, %v504, %v506
        %v511 = vsel %vm509, %v506, %v508
        %514 = vst [vmem:[#allocation3 + $0x30] sm:$0xf] %v510
        %515 = vst [vmem:[#allocation3 + $0x38] sm:$0xf] %v511
        %v516 = vld [vmem:[#allocation2] sm:$0xff]
        %v517 = vld [vmem:[#allocation2 + $0x8] sm:$0xf]
        %s518 = scalar_lea.vmem [#allocation7], 7
        %v519 = vld [vmem:[%s518] ss:$8 sm:$0x3]
        %v521 = vperm.slane %v519, 0
        %v522 = vperm.slane %v519, 1
        %v523 = vrot.slane %v522, 4
        %v524 = vsel %vm285, %v521, %v523
        %525 = vrot.lane.b32.xlu0 %v524, 33
        %v526 = vpop.permute.xlu0 %525
        %v527 = vrot.slane %v526, 4
        %vm528 = vcmask 269312
        %v529 = vsel %vm528, %v527, %v526
        %v532 = vmul.f32 %v516, %v529
        %v533 = vmul.f32 %v517, %v527
        %s536 = scalar_lea.vmem [#allocation1], 1
        %537 = vst [vmem:[%s536] ss:$2 sm:$0xff] %v532
        %s538 = scalar_lea.vmem [#allocation1], 17
        %539 = vst [vmem:[%s538] ss:$2 sm:$0xff] %v533
        %v540 = vld.sshfl [vmem:[#allocation1] sm:$0xff pattern:$0x75316420]
        %v541 = vld.sshfl [vmem:[#allocation1 + $0x8] sm:$0xff pattern:$0x75316420]
        %v542 = vld.sshfl [vmem:[#allocation1 + $0x10] sm:$0xff pattern:$0x75316420]
        %543 = vrot.lane.b32.xlu0 %v540, 95
        %v544 = vpop.permute.xlu0 %543
        %545 = vrot.lane.b32.xlu0 %v541, 95
        %v546 = vpop.permute.xlu0 %545
        %547 = vrot.lane.b32.xlu0 %v542, 95
        %v548 = vpop.permute.xlu0 %547
        %vm549 = vcmask 777216
        %v550 = vsel %vm549, %v544, %v546
        %v551 = vsel %vm549, %v546, %v548
        %554 = vst [vmem:[#allocation3 + $0x30] sm:$0xf0] %v550
        %555 = vst [vmem:[#allocation3 + $0x38] sm:$0xf0] %v551
        %v556 = vld [vmem:[#allocation2] sm:$0xff]
        %v557 = vld [vmem:[#allocation2 + $0x8] sm:$0xf]
        %s558 = scalar_lea.vmem [#allocation7], 16
        %v559 = vld [vmem:[%s558] ss:$8 sm:$0x3]
        %v561 = vperm.slane %v559, 0
        %v562 = vperm.slane %v559, 1
        %v563 = vrot.slane %v562, 4
        %v564 = vsel %vm285, %v561, %v563
        %565 = vrot.lane.b32.xlu0 %v564, 34
        %v566 = vpop.permute.xlu0 %565
        %v567 = vrot.slane %v566, 4
        %vm568 = vcmask 277504
        %v569 = vsel %vm568, %v567, %v566
        %v572 = vmul.f32 %v556, %v569
        %v573 = vmul.f32 %v557, %v567
        %576 = vst [vmem:[#allocation1] ss:$2 sm:$0xff] %v572
        %s577 = scalar_lea.vmem [#allocation1], 16
        %578 = vst [vmem:[%s577] ss:$2 sm:$0xff] %v573
        %v579 = vld.sshfl [vmem:[#allocation1] sm:$0xff pattern:$0x75316420]
        %v580 = vld.sshfl [vmem:[#allocation1 + $0x8] sm:$0xff pattern:$0x75316420]
        %v581 = vld.sshfl [vmem:[#allocation1 + $0x10] sm:$0xff pattern:$0x75316420]
        %582 = vrot.lane.b32.xlu0 %v579, 94
        %v583 = vpop.permute.xlu0 %582
        %584 = vrot.lane.b32.xlu0 %v580, 94
        %v585 = vpop.permute.xlu0 %584
        %586 = vrot.lane.b32.xlu0 %v581, 94
        %v587 = vpop.permute.xlu0 %586
        %vm588 = vcmask 769024
        %v589 = vsel %vm588, %v583, %v585
        %v590 = vsel %vm588, %v585, %v587
        %593 = vst [vmem:[#allocation3 + $0x40] sm:$0xf] %v589
        %594 = vst [vmem:[#allocation3 + $0x48] sm:$0xf] %v590
        %v595 = vld [vmem:[%s1] sm:$0xf]
        %v596 = vld [vmem:[#allocation3] sm:$0xff]
        %v597 = vld [vmem:[#allocation3 + $0x8] sm:$0xff]
        %v598 = vld [vmem:[#allocation3 + $0x10] sm:$0xff]
        %v599 = vld [vmem:[#allocation3 + $0x18] sm:$0xff]
        %v600 = vld [vmem:[#allocation3 + $0x20] sm:$0xff]
        %v601 = vld [vmem:[#allocation3 + $0x28] sm:$0xff]
        %v602 = vld [vmem:[#allocation3 + $0x30] sm:$0xff]
        %v603 = vld [vmem:[#allocation3 + $0x38] sm:$0xff]
        %v604 = vld [vmem:[#allocation3 + $0x40] sm:$0xf]
        %v605 = vld [vmem:[#allocation3 + $0x48] sm:$0xf]
        %v606 = vld [vmem:[%s3] sm:$0xf]
        %608 = vset.pattern.permute.xlu0 0
        %609 = vperm.xlu0 %608, %v606
        %v610 = vpop.permute.xlu0 %609
        %vm612 = vcmask 293888
        %v614 = vsel %vm612, %v595, 0
        %v617 = vsel %vm285, %v604, 0
        %v620 = vsel %vm285, %v605, 0
        %622 = vmatpush.msra.mxu0 0.0
        %623 = vmatpush.msra.mxu0 0.0
        %624 = vmatpush.msra.mxu0 0.0
        %625 = vmatpush.msra.mxu0 0.0
        %626 = vmatpush.msra.mxu0 0.0
        %627 = vmatpush.msra.mxu0 0.0
        %628 = vmatpush.msra.mxu0 0.0
        %629 = vmatpush.msra.mxu0 0.0
        %630 = vmatpush.msra.mxu0 0.0
        %631 = vmatpush.msra.mxu0 0.0
        %632 = vmatpush.msra.mxu0 0.0
        %633 = vmatpush.msra.mxu0 %v617
        %634 = vmatpush.msra.mxu0 %v602
        %635 = vmatpush.msra.mxu0 %v600
        %636 = vmatpush.msra.mxu0 %v598
        %637 = vmatpush.msra.mxu0 %v596
        %638 = vmatmul.f32.gmra.mxu0 %v614
        %v639 = vpop.f32.mrf.mxu0
        %v640 = vadd.f32 %v610, %v639
        %641 = vdwg.mxu0
        %642 = vmatpush.msra.mxu0 0.0
        %643 = vmatpush.msra.mxu0 0.0
        %644 = vmatpush.msra.mxu0 0.0
        %645 = vmatpush.msra.mxu0 0.0
        %646 = vmatpush.msra.mxu0 0.0
        %647 = vmatpush.msra.mxu0 0.0
        %648 = vmatpush.msra.mxu0 0.0
        %649 = vmatpush.msra.mxu0 0.0
        %650 = vmatpush.msra.mxu0 0.0
        %651 = vmatpush.msra.mxu0 0.0
        %652 = vmatpush.msra.mxu0 0.0
        %653 = vmatpush.msra.mxu0 %v620
        %654 = vmatpush.msra.mxu0 %v603
        %655 = vmatpush.msra.mxu0 %v601
        %656 = vmatpush.msra.mxu0 %v599
        %657 = vmatpush.msra.mxu0 %v597
        %658 = vmatmul.f32.gmra.mxu0 %v614
        %v659 = vpop.f32.mrf.mxu0
        %v660 = vadd.f32 %v610, %v659
        %661 = vdwg.mxu0
        %v662 = vmax.f32 %v640, 0.0
        %v663 = vmax.f32 %v660, 0.0
        %v666 = vrot.slane %v663, 4
        %v667 = vsel %vm285, %v662, %v666
        %668 = vrot.lane.b32.xlu0 %v667, 17
        %v669 = vpop.permute.xlu0 %668
        %v670 = vrot.slane %v669, 4
        %v671 = vsel %vm269, %v670, %v669
        %674 = vst.msk [vmem:[#allocation2] sm:$0xff] %vm275, %v671
        %675 = vst.msk [vmem:[#allocation2 + $0x8] sm:$0xf] %vm260, %v670
        %v676 = vld [vmem:[#allocation2] sm:$0xff]
        %v677 = vld [vmem:[#allocation7] ss:$8 sm:$0x3]
        %v679 = vperm.slane %v677, 0
        %v680 = vperm.slane %v677, 1
        %v681 = vrot.slane %v680, 4
        %v682 = vsel %vm285, %v679, %v681
        %v684 = vmul.f32 %v676, %v682
        %686 = vst [vmem:[#allocation1] ss:$2 sm:$0xff] %v684
        %v687 = vld.sshfl [vmem:[#allocation1] sm:$0xff pattern:$0x75316420]
        %v688 = vld.sshfl [vmem:[#allocation1 + $0x8] sm:$0xff pattern:$0x75316420]
        %691 = vst [vmem:[#allocation3] sm:$0xf] %v687
        %692 = vst [vmem:[#allocation3 + $0x8] sm:$0xf] %v688
        %v693 = vld [vmem:[#allocation2] sm:$0xff]
        %v694 = vld [vmem:[#allocation2 + $0x8] sm:$0xf]
        %v695 = vld [vmem:[%s299] ss:$8 sm:$0x3]
        %v697 = vperm.slane %v695, 0
        %v698 = vperm.slane %v695, 1
        %v699 = vrot.slane %v698, 4
        %v700 = vsel %vm285, %v697, %v699
        %701 = vrot.lane.b32.xlu0 %v700, 1
        %v702 = vpop.permute.xlu0 %701
        %v703 = vrot.slane %v702, 4
        %v704 = vsel %vm309, %v703, %v702
        %v707 = vmul.f32 %v693, %v704
        %v708 = vmul.f32 %v694, %v703
        %s711 = scalar_lea.vmem [#allocation1], 1
        %712 = vst [vmem:[%s711] ss:$2 sm:$0xff] %v707
        %s713 = scalar_lea.vmem [#allocation1], 17
        %714 = vst [vmem:[%s713] ss:$2 sm:$0xff] %v708
        %v715 = vld.sshfl [vmem:[#allocation1] sm:$0xff pattern:$0x75316420]
        %v716 = vld.sshfl [vmem:[#allocation1 + $0x8] sm:$0xff pattern:$0x75316420]
        %v717 = vld.sshfl [vmem:[#allocation1 + $0x10] sm:$0xff pattern:$0x75316420]
        %718 = vrot.lane.b32.xlu0 %v715, 127
        %v719 = vpop.permute.xlu0 %718
        %720 = vrot.lane.b32.xlu0 %v716, 127
        %v721 = vpop.permute.xlu0 %720
        %722 = vrot.lane.b32.xlu0 %v717, 127
        %v723 = vpop.permute.xlu0 %722
        %v724 = vsel %vm330, %v719, %v721
        %v725 = vsel %vm330, %v721, %v723
        %728 = vst [vmem:[#allocation3] sm:$0xf0] %v724
        %729 = vst [vmem:[#allocation3 + $0x8] sm:$0xf0] %v725
        %v730 = vld [vmem:[#allocation2] sm:$0xff]
        %v731 = vld [vmem:[#allocation2 + $0x8] sm:$0xf]
        %v732 = vld [vmem:[%s339] ss:$8 sm:$0x3]
        %v734 = vperm.slane %v732, 0
        %v735 = vperm.slane %v732, 1
        %v736 = vrot.slane %v735, 4
        %v737 = vsel %vm285, %v734, %v736
        %738 = vrot.lane.b32.xlu0 %v737, 2
        %v739 = vpop.permute.xlu0 %738
        %v740 = vrot.slane %v739, 4
        %v741 = vsel %vm349, %v740, %v739
        %v744 = vmul.f32 %v730, %v741
        %v745 = vmul.f32 %v731, %v740
        %748 = vst [vmem:[#allocation1] ss:$2 sm:$0xff] %v744
        %s749 = scalar_lea.vmem [#allocation1], 16
        %750 = vst [vmem:[%s749] ss:$2 sm:$0xff] %v745
        %v751 = vld.sshfl [vmem:[#allocation1] sm:$0xff pattern:$0x75316420]
        %v752 = vld.sshfl [vmem:[#allocation1 + $0x8] sm:$0xff pattern:$0x75316420]
        %v753 = vld.sshfl [vmem:[#allocation1 + $0x10] sm:$0xff pattern:$0x75316420]
        %754 = vrot.lane.b32.xlu0 %v751, 126
        %v755 = vpop.permute.xlu0 %754
        %756 = vrot.lane.b32.xlu0 %v752, 126
        %v757 = vpop.permute.xlu0 %756
        %758 = vrot.lane.b32.xlu0 %v753, 126
        %v759 = vpop.permute.xlu0 %758
        %v760 = vsel %vm369, %v755, %v757
        %v761 = vsel %vm369, %v757, %v759
        %764 = vst [vmem:[#allocation3 + $0x10] sm:$0xf] %v760
        %765 = vst [vmem:[#allocation3 + $0x18] sm:$0xf] %v761
        %v766 = vld [vmem:[#allocation2] sm:$0xff]
        %v767 = vld [vmem:[#allocation2 + $0x8] sm:$0xf]
        %v768 = vld [vmem:[%s378] ss:$8 sm:$0x3]
        %v770 = vperm.slane %v768, 0
        %v771 = vperm.slane %v768, 1
        %v772 = vrot.slane %v771, 4
        %v773 = vsel %vm285, %v770, %v772
        %774 = vrot.lane.b32.xlu0 %v773, 16
        %v775 = vpop.permute.xlu0 %774
        %v776 = vrot.slane %v775, 4
        %v777 = vsel %vm388, %v776, %v775
        %v780 = vmul.f32 %v766, %v777
        %v781 = vmul.f32 %v767, %v776
        %s784 = scalar_lea.vmem [#allocation1], 1
        %785 = vst [vmem:[%s784] ss:$2 sm:$0xff] %v780
        %s786 = scalar_lea.vmem [#allocation1], 17
        %787 = vst [vmem:[%s786] ss:$2 sm:$0xff] %v781
        %v788 = vld.sshfl [vmem:[#allocation1] sm:$0xff pattern:$0x75316420]
        %v789 = vld.sshfl [vmem:[#allocation1 + $0x8] sm:$0xff pattern:$0x75316420]
        %v790 = vld.sshfl [vmem:[#allocation1 + $0x10] sm:$0xff pattern:$0x75316420]
        %791 = vrot.lane.b32.xlu0 %v788, 112
        %v792 = vpop.permute.xlu0 %791
        %793 = vrot.lane.b32.xlu0 %v789, 112
        %v794 = vpop.permute.xlu0 %793
        %795 = vrot.lane.b32.xlu0 %v790, 112
        %v796 = vpop.permute.xlu0 %795
        %v797 = vsel %vm409, %v792, %v794
        %v798 = vsel %vm409, %v794, %v796
        %801 = vst [vmem:[#allocation3 + $0x10] sm:$0xf0] %v797
        %802 = vst [vmem:[#allocation3 + $0x18] sm:$0xf0] %v798
        %803 = vst [vmem:[#allocation3 + $0x20] sm:$0xf] %v662
        %804 = vst [vmem:[#allocation3 + $0x28] sm:$0xf] %v663
        %v805 = vld [vmem:[#allocation2] sm:$0xff]
        %v806 = vld [vmem:[#allocation2 + $0x8] sm:$0xf]
        %v807 = vld [vmem:[%s439] ss:$8 sm:$0x3]
        %v809 = vperm.slane %v807, 0
        %v810 = vperm.slane %v807, 1
        %v811 = vrot.slane %v810, 4
        %v812 = vsel %vm285, %v809, %v811
        %813 = vrot.lane.b32.xlu0 %v812, 18
        %v814 = vpop.permute.xlu0 %813
        %v815 = vrot.slane %v814, 4
        %v816 = vsel %vm449, %v815, %v814
        %v819 = vmul.f32 %v805, %v816
        %v820 = vmul.f32 %v806, %v815
        %s823 = scalar_lea.vmem [#allocation1], 1
        %824 = vst [vmem:[%s823] ss:$2 sm:$0xff] %v819
        %s825 = scalar_lea.vmem [#allocation1], 17
        %826 = vst [vmem:[%s825] ss:$2 sm:$0xff] %v820
        %v827 = vld.sshfl [vmem:[#allocation1] sm:$0xff pattern:$0x75316420]
        %v828 = vld.sshfl [vmem:[#allocation1 + $0x8] sm:$0xff pattern:$0x75316420]
        %v829 = vld.sshfl [vmem:[#allocation1 + $0x10] sm:$0xff pattern:$0x75316420]
        %830 = vrot.lane.b32.xlu0 %v827, 110
        %v831 = vpop.permute.xlu0 %830
        %832 = vrot.lane.b32.xlu0 %v828, 110
        %v833 = vpop.permute.xlu0 %832
        %834 = vrot.lane.b32.xlu0 %v829, 110
        %v835 = vpop.permute.xlu0 %834
        %v836 = vsel %vm470, %v831, %v833
        %v837 = vsel %vm470, %v833, %v835
        %840 = vst [vmem:[#allocation3 + $0x20] sm:$0xf0] %v836
        %841 = vst [vmem:[#allocation3 + $0x28] sm:$0xf0] %v837
        %v842 = vld [vmem:[#allocation2] sm:$0xff]
        %v843 = vld [vmem:[#allocation2 + $0x8] sm:$0xf]
        %v844 = vld [vmem:[%s479] ss:$8 sm:$0x3]
        %v846 = vperm.slane %v844, 0
        %v847 = vperm.slane %v844, 1
        %v848 = vrot.slane %v847, 4
        %v849 = vsel %vm285, %v846, %v848
        %850 = vrot.lane.b32.xlu0 %v849, 32
        %v851 = vpop.permute.xlu0 %850
        %v852 = vrot.slane %v851, 4
        %v853 = vsel %vm489, %v852, %v851
        %v856 = vmul.f32 %v842, %v853
        %v857 = vmul.f32 %v843, %v852
        %860 = vst [vmem:[#allocation1] ss:$2 sm:$0xff] %v856
        %s861 = scalar_lea.vmem [#allocation1], 16
        %862 = vst [vmem:[%s861] ss:$2 sm:$0xff] %v857
        %v863 = vld.sshfl [vmem:[#allocation1] sm:$0xff pattern:$0x75316420]
        %v864 = vld.sshfl [vmem:[#allocation1 + $0x8] sm:$0xff pattern:$0x75316420]
        %v865 = vld.sshfl [vmem:[#allocation1 + $0x10] sm:$0xff pattern:$0x75316420]
        %866 = vrot.lane.b32.xlu0 %v863, 96
        %v867 = vpop.permute.xlu0 %866
        %868 = vrot.lane.b32.xlu0 %v864, 96
        %v869 = vpop.permute.xlu0 %868
        %870 = vrot.lane.b32.xlu0 %v865, 96
        %v871 = vpop.permute.xlu0 %870
        %v872 = vsel %vm509, %v867, %v869
        %v873 = vsel %vm509, %v869, %v871
        %876 = vst [vmem:[#allocation3 + $0x30] sm:$0xf] %v872
        %877 = vst [vmem:[#allocation3 + $0x38] sm:$0xf] %v873
        %v878 = vld [vmem:[#allocation2] sm:$0xff]
        %v879 = vld [vmem:[#allocation2 + $0x8] sm:$0xf]
        %v880 = vld [vmem:[%s518] ss:$8 sm:$0x3]
        %v882 = vperm.slane %v880, 0
        %v883 = vperm.slane %v880, 1
        %v884 = vrot.slane %v883, 4
        %v885 = vsel %vm285, %v882, %v884
        %886 = vrot.lane.b32.xlu0 %v885, 33
        %v887 = vpop.permute.xlu0 %886
        %v888 = vrot.slane %v887, 4
        %v889 = vsel %vm528, %v888, %v887
        %v892 = vmul.f32 %v878, %v889
        %v893 = vmul.f32 %v879, %v888
        %s896 = scalar_lea.vmem [#allocation1], 1
        %897 = vst [vmem:[%s896] ss:$2 sm:$0xff] %v892
        %s898 = scalar_lea.vmem [#allocation1], 17
        %899 = vst [vmem:[%s898] ss:$2 sm:$0xff] %v893
        %v900 = vld.sshfl [vmem:[#allocation1] sm:$0xff pattern:$0x75316420]
        %v901 = vld.sshfl [vmem:[#allocation1 + $0x8] sm:$0xff pattern:$0x75316420]
        %v902 = vld.sshfl [vmem:[#allocation1 + $0x10] sm:$0xff pattern:$0x75316420]
        %903 = vrot.lane.b32.xlu0 %v900, 95
        %v904 = vpop.permute.xlu0 %903
        %905 = vrot.lane.b32.xlu0 %v901, 95
        %v906 = vpop.permute.xlu0 %905
        %907 = vrot.lane.b32.xlu0 %v902, 95
        %v908 = vpop.permute.xlu0 %907
        %v909 = vsel %vm549, %v904, %v906
        %v910 = vsel %vm549, %v906, %v908
        %913 = vst [vmem:[#allocation3 + $0x30] sm:$0xf0] %v909
        %914 = vst [vmem:[#allocation3 + $0x38] sm:$0xf0] %v910
        %v915 = vld [vmem:[#allocation2] sm:$0xff]
        %v916 = vld [vmem:[#allocation2 + $0x8] sm:$0xf]
        %v917 = vld [vmem:[%s558] ss:$8 sm:$0x3]
        %v919 = vperm.slane %v917, 0
        %v920 = vperm.slane %v917, 1
        %v921 = vrot.slane %v920, 4
        %v922 = vsel %vm285, %v919, %v921
        %923 = vrot.lane.b32.xlu0 %v922, 34
        %v924 = vpop.permute.xlu0 %923
        %v925 = vrot.slane %v924, 4
        %v926 = vsel %vm568, %v925, %v924
        %v929 = vmul.f32 %v915, %v926
        %v930 = vmul.f32 %v916, %v925
        %933 = vst [vmem:[#allocation1] ss:$2 sm:$0xff] %v929
        %s934 = scalar_lea.vmem [#allocation1], 16
        %935 = vst [vmem:[%s934] ss:$2 sm:$0xff] %v930
        %v936 = vld.sshfl [vmem:[#allocation1] sm:$0xff pattern:$0x75316420]
        %v937 = vld.sshfl [vmem:[#allocation1 + $0x8] sm:$0xff pattern:$0x75316420]
        %v938 = vld.sshfl [vmem:[#allocation1 + $0x10] sm:$0xff pattern:$0x75316420]
        %939 = vrot.lane.b32.xlu0 %v936, 94
        %v940 = vpop.permute.xlu0 %939
        %941 = vrot.lane.b32.xlu0 %v937, 94
        %v942 = vpop.permute.xlu0 %941
        %943 = vrot.lane.b32.xlu0 %v938, 94
        %v944 = vpop.permute.xlu0 %943
        %v945 = vsel %vm588, %v940, %v942
        %v946 = vsel %vm588, %v942, %v944
        %949 = vst [vmem:[#allocation3 + $0x40] sm:$0xf] %v945
        %950 = vst [vmem:[#allocation3 + $0x48] sm:$0xf] %v946
        %v951 = vld [vmem:[%s2] sm:$0xf]
        %v952 = vld [vmem:[#allocation3] sm:$0xff]
        %v953 = vld [vmem:[#allocation3 + $0x8] sm:$0xff]
        %v954 = vld [vmem:[#allocation3 + $0x10] sm:$0xff]
        %v955 = vld [vmem:[#allocation3 + $0x18] sm:$0xff]
        %v956 = vld [vmem:[#allocation3 + $0x20] sm:$0xff]
        %v957 = vld [vmem:[#allocation3 + $0x28] sm:$0xff]
        %v958 = vld [vmem:[#allocation3 + $0x30] sm:$0xff]
        %v959 = vld [vmem:[#allocation3 + $0x38] sm:$0xff]
        %v960 = vld [vmem:[#allocation3 + $0x40] sm:$0xf]
        %v961 = vld [vmem:[#allocation3 + $0x48] sm:$0xf]
        %s962 = scalar_lea.vmem %s3, 4
        %v963 = vld [vmem:[%s962] sm:$0xf]
        %965 = vset.pattern.permute.xlu0 0
        %966 = vperm.xlu0 %965, %v963
        %v967 = vpop.permute.xlu0 %966
        %v970 = vsel %vm612, %v951, 0
        %v973 = vsel %vm285, %v960, 0
        %v976 = vsel %vm285, %v961, 0
        %978 = vmatpush.msra.mxu0 0.0
        %979 = vmatpush.msra.mxu0 0.0
        %980 = vmatpush.msra.mxu0 0.0
        %981 = vmatpush.msra.mxu0 0.0
        %982 = vmatpush.msra.mxu0 0.0
        %983 = vmatpush.msra.mxu0 0.0
        %984 = vmatpush.msra.mxu0 0.0
        %985 = vmatpush.msra.mxu0 0.0
        %986 = vmatpush.msra.mxu0 0.0
        %987 = vmatpush.msra.mxu0 0.0
        %988 = vmatpush.msra.mxu0 0.0
        %989 = vmatpush.msra.mxu0 %v973
        %990 = vmatpush.msra.mxu0 %v958
        %991 = vmatpush.msra.mxu0 %v956
        %992 = vmatpush.msra.mxu0 %v954
        %993 = vmatpush.msra.mxu0 %v952
        %994 = vmatmul.f32.gmra.mxu0 %v970
        %v995 = vpop.f32.mrf.mxu0
        %v996 = vadd.f32 %v967, %v995
        %997 = vdwg.mxu0
        %998 = vmatpush.msra.mxu0 0.0
        %999 = vmatpush.msra.mxu0 0.0
        %1000 = vmatpush.msra.mxu0 0.0
        %1001 = vmatpush.msra.mxu0 0.0
        %1002 = vmatpush.msra.mxu0 0.0
        %1003 = vmatpush.msra.mxu0 0.0
        %1004 = vmatpush.msra.mxu0 0.0
        %1005 = vmatpush.msra.mxu0 0.0
        %1006 = vmatpush.msra.mxu0 0.0
        %1007 = vmatpush.msra.mxu0 0.0
        %1008 = vmatpush.msra.mxu0 0.0
        %1009 = vmatpush.msra.mxu0 %v976
        %1010 = vmatpush.msra.mxu0 %v959
        %1011 = vmatpush.msra.mxu0 %v957
        %1012 = vmatpush.msra.mxu0 %v955
        %1013 = vmatpush.msra.mxu0 %v953
        %1014 = vmatmul.f32.gmra.mxu0 %v970
        %v1015 = vpop.f32.mrf.mxu0
        %v1016 = vadd.f32 %v967, %v1015
        %1017 = vdwg.mxu0
        %1018 = vst [vmem:[#allocation1] ss:$2 sm:$0xff] %v278
        %s1019 = scalar_lea.vmem [#allocation1], 16
        %1020 = vst [vmem:[%s1019] ss:$2 sm:$0xff] %v279
        %v1021 = vld.sshfl [vmem:[#allocation1] sm:$0xff pattern:$0x75316420]
        %v1022 = vld.sshfl [vmem:[#allocation1 + $0x8] sm:$0xff pattern:$0x75316420]
        %v1023 = vld.sshfl [vmem:[#allocation1 + $0x10] sm:$0xff pattern:$0x75316420]
        %1024 = vrot.lane.b32.xlu0 %v1021, 111
        %v1025 = vpop.permute.xlu0 %1024
        %1026 = vrot.lane.b32.xlu0 %v1022, 111
        %v1027 = vpop.permute.xlu0 %1026
        %1028 = vrot.lane.b32.xlu0 %v1023, 111
        %v1029 = vpop.permute.xlu0 %1028
        %v1030 = vsel %vm430, %v1025, %v1027
        %v1031 = vsel %vm430, %v1027, %v1029
        %v1034 = vadd.f32 %v996, %v1030
        %v1035 = vadd.f32 %v1016, %v1031
        %v1036 = vmax.f32 %v1034, 0.0
        %v1037 = vmax.f32 %v1035, 0.0
        %v1040 = vrot.slane %v1037, 4
        %v1041 = vsel %vm285, %v1036, %v1040
        %1043 = vst [vmem:[%s259] sm:$0xff] %v1041
        %s1044 = sand.u32 %s141, 1
        %s1045 = scalar_lea.sflag [#allocation6], %s1044
        %s1046 = sand.u32 %s141, 1
        %s1047 = smul.addr %s1046, 8
        %s1048 = scalar_lea.vmem [#allocation9], %s1047
        // Predicated region
        $region49: #{tpu_custom_call.1} parent=39 // pred_check
          %p1049 = pneg %p151
        $region50: #{tpu_custom_call.1} parent=39 // pred_check_branch
          %1051 = sbr.rel (%p1049) target = $region52
        $region51: #{tpu_custom_call.1} parent=39 // pred_region
          %1053 = vsyncadd %s1045, 0
          %s1054 = smul.addr %s23, 2
          %s1055 = smul.addr %s1054, 4
          %s1056 = scalar_lea.hbm %s5, %s1055
          %s1058 = sshll.u32 %s1048, 4
          %s1059 = int_to_ptr.vmem [resolvable:$true] %s1058
          %s1060 = sshll.u32 %s1056, 4
          %s1061 = int_to_ptr.hbm [resolvable:$true] %s1060
          %1063 = dma.vmem_to_hbm [thread:$0]  %s1059, 128, %s1061, %s1045
        $region52: #{tpu_custom_call.1} parent=39 // pred_fallthru
          _
      $region40: #{tpu_custom_call.1} parent=5 // pred_fallthru
        _
      %p1064 = scmp.le.s32.totalorder 2, %s18
      // Predicated region
      $region53: #{tpu_custom_call.1} parent=5 // pred_check
        %p1065 = pneg %p1064
      $region54: #{tpu_custom_call.1} parent=5 // pred_check_branch
        %1067 = sbr.rel (%p1065) target = $region56
      $region55: #{tpu_custom_call.1} parent=5 // pred_region
        %s1068 = ssub.s32 %s18, 2
        // Predicated region
        $region57: #{tpu_custom_call.1} parent=55 // pred_check
          %p1069 = pneg %p157
        $region58: #{tpu_custom_call.1} parent=55 // pred_check_branch
          %1071 = sbr.rel (%p1069) target = $region60
        $region59: #{tpu_custom_call.1} parent=55 // pred_region
          %s1072 = sand.u32 %s142, 1
          %s1073 = scalar_lea.sflag [#allocation6], %s1072
          %s1074 = sand.u32 %s142, 1
          %s1075 = smul.addr %s1074, 8
          %s1076 = scalar_lea.vmem [#allocation9], %s1075
          %1078 = dma.done %s1073, 128
        $region60: #{tpu_custom_call.1} parent=55 // pred_fallthru
          _
      $region56: #{tpu_custom_call.1} parent=5 // pred_fallthru
        _
    $region6: #{tpu_custom_call.1} parent=1 // loop_footer
      %s22 = sadd.s32 1, %s18
    $region7: #{tpu_custom_call.1} parent=1 // loop_footer_branch
      %17 = sbr.rel target = $region3
    $region8: #{tpu_custom_call.1} parent=1 // loop_exit
      _
    %1079 = vsyncpa [#allocation5], 1
    %s1080 = scalar_lea.sflag [#allocation5], 1
    %1081 = vsyncpa %s1080, 1
    %1082 = vsyncpa [#allocation8], 1
    %1083 = vsyncpa [#allocation6], 1
    %s1084 = scalar_lea.sflag [#allocation6], 1
    %1085 = vsyncpa %s1084, 1

</llo_original>
